<compile_context>
chip_gen: v6e
topology: v6e:2x2x1
jax: 0.10.0
libtpu: 0.0.40
codegen_flags: <defaults>
</compile_context>

<pallas_src>
import functools
import math

import jax
import jax.numpy as jnp
from jax.experimental import pallas as pl
from jax.experimental.pallas import tpu as pltpu

LN_EPS = 1e-5
NEG_INF = -1e30  # finite additive key-padding bias (online-softmax math never NaNs)


# --------------------------------------------------------------------------------------
# Spec / VMEM helpers
# --------------------------------------------------------------------------------------
def _spec(shape, index_map, single_buffer=False):
    """BlockSpec, optionally single-buffered (pl.Buffered(1)) for resident blocks."""
    if single_buffer and hasattr(pl, "Buffered"):
        try:
            return pl.BlockSpec(shape, index_map, pipeline_mode=pl.Buffered(1))
        except TypeError:  # older jax without pipeline_mode
            pass
    return pl.BlockSpec(shape, index_map)


def _const_spec(shape, single_buffer=False):
    """Grid-constant block (weights / biases): block index is always 0."""
    return _spec(shape, lambda *_: (0,) * len(shape), single_buffer)


def _vmem_limit(need_bytes):
    """Explicit scoped-VMEM request: None when the default (16/32 MiB) is plenty,
    otherwise the need (+margin) capped at 64 MiB so the request also fits v7x."""
    need = int(need_bytes * 1.5)
    if need <= 12 * 1024 * 1024:
        return None
    return min(need, 64 * 1024 * 1024)


# --------------------------------------------------------------------------------------
# Kernel 1: LayerNorm -> ReLU -> Q / K^T / V projections (head-major outputs)
# --------------------------------------------------------------------------------------
def _qkv_projection_kernel(x_ref, gamma_ref, beta_ref,
                           wq_ref, bq_ref, wk_ref, bk_ref, wv_ref, bv_ref,
                           q_ref, kt_ref, v_ref, *, num_heads):
    x = x_ref[...]                                                    # (T, E) f32
    mean = jnp.mean(x, axis=-1, keepdims=True)
    var = jnp.mean(jnp.square(x - mean), axis=-1, keepdims=True)
    xn = (x - mean) * jax.lax.rsqrt(var + LN_EPS)
    xn = xn * gamma_ref[...] + beta_ref[...]
    xr = jnp.maximum(xn, 0.0)                                         # f32 elementwise path

    mm_dtype = wq_ref.dtype                                           # bf16 MXU operands
    xr_m = xr.astype(mm_dtype)                                        # (T, E)
    xr_t = xr_m.T                                                     # (E, T): transpose after the cast (half the XLU traffic)

    dh = q_ref.shape[-1]

    # Fused full-E contractions (f32 accumulate).  Softmax scale already folded into Wq/bq.
    q = jnp.dot(xr_m, wq_ref[...], preferred_element_type=jnp.float32) + bq_ref[...]
    kt = jnp.dot(wk_ref[...], xr_t, preferred_element_type=jnp.float32) + bk_ref[...]
    v = jnp.dot(xr_m, wv_ref[...], preferred_element_type=jnp.float32) + bv_ref[...]

    # Head-major stores (leading-dim head index in the attention kernel).  The K^T split
    # is an aligned sublane slice; the Q/V lane splits happen once per row tile here
    # instead of on every KV step of the attention inner loop.
    for h in range(num_heads):
        sl = slice(h * dh, (h + 1) * dh)
        q_ref[h] = q[:, sl].astype(q_ref.dtype)
        kt_ref[h] = kt[sl, :].astype(kt_ref.dtype)
        v_ref[h] = v[:, sl].astype(v_ref.dtype)


# --------------------------------------------------------------------------------------
# Kernel 2: flash attention (online softmax over KV tiles) + out-proj + mask + residual
# --------------------------------------------------------------------------------------
def _attention_kernel(q_ref, kt_ref, v_ref, mask_k_ref, mask_q_ref, x_ref,
                      wo_ref, bo_ref, out_ref,
                      acc_ref, m_ref, l_ref, *, num_heads, block_k, kv_resident):
    ki = pl.program_id(2)

    @pl.when(ki == 0)
    def _():
        m_ref[...] = jnp.full(m_ref.shape, -jnp.inf, dtype=m_ref.dtype)
        l_ref[...] = jnp.zeros(l_ref.shape, dtype=l_ref.dtype)
        acc_ref[...] = jnp.zeros(acc_ref.shape, dtype=acc_ref.dtype)

    # Key-padding terms for this KV tile, (1, TK): hoisted out of the head loop and
    # broadcast inside the adds / muls below (no (TQ, TK) materialization).
    mask_k = mask_k_ref[...]                                          # 1.0 == padded
    bias_k = mask_k * NEG_INF                                         # additive bias
    valid_k = 1.0 - mask_k                                            # validity multiplier

    if kv_resident:
        k_start = pl.multiple_of(ki * block_k, block_k)

    for h in range(num_heads):
        q_h = q_ref[h]                                                # (TQ, dh) bf16
        if kv_resident:
            kt_h = kt_ref[h, :, pl.ds(k_start, block_k)]              # (dh, TK) bf16
            v_h = v_ref[h, pl.ds(k_start, block_k), :]                # (TK, dh) bf16
        else:
            kt_h = kt_ref[h]
            v_h = v_ref[h]

        # Scale is already folded into Wq/bq -> no per-step VPU multiply here.
        s = jnp.dot(q_h, kt_h, preferred_element_type=jnp.float32) + bias_k

        m_prev = m_ref[h]                                             # (TQ, 1)
        m_new = jnp.maximum(m_prev, jnp.max(s, axis=-1, keepdims=True))
        alpha = jnp.exp(m_prev - m_new)                               # (TQ, 1)
        # Zeroing padded columns keeps l / acc clean even for an all-padded KV tile.
        p = jnp.exp(s - m_new) * valid_k                              # (TQ, TK)

        l_ref[h] = alpha * l_ref[h] + jnp.sum(p, axis=-1, keepdims=True)
        m_ref[h] = m_new
        acc_ref[h] = alpha * acc_ref[h] + jnp.dot(
            p.astype(v_h.dtype), v_h, preferred_element_type=jnp.float32)

    @pl.when(ki == pl.num_programs(2) - 1)
    def _():
        # Exact normalization (finalize only -> negligible cost) + per-head out-proj
        # (leading-dim indexed Wo slabs -> no H-way lane concatenation).
        mm_dtype = wo_ref.dtype
        proj = bo_ref[...]                                            # (1, E) f32
        for h in range(num_heads):
            o_h = acc_ref[h] / jnp.maximum(l_ref[h], 1e-30)           # (TQ, dh) f32
            proj = proj + jnp.dot(o_h.astype(mm_dtype), wo_ref[h],
                                  preferred_element_type=jnp.float32)
        # torch.where(~mask.unsqueeze(-1), x1, 0): zero padded *query* rows.
        proj = jnp.where(mask_q_ref[...] > 0.5, 0.0, proj)
        out_ref[...] = x_ref[...] + proj                              # residual


# --------------------------------------------------------------------------------------
# Wrapper
# --------------------------------------------------------------------------------------
def transformer_layer(x, mask, params, num_heads, *, block_seq=512,
                      matmul_dtype=jnp.bfloat16,
                      kv_resident_limit_bytes=12 * 1024 * 1024,
                      single_buffer_weights=True):
    """x: (B, S, E) f32, mask: (B, S) bool (True == padded position)."""
    B, S, E = x.shape
    assert E % num_heads == 0, "embed dim must be divisible by num_heads"
    dh = E // num_heads
    scale = 1.0 / math.sqrt(dh)

    # Sequence tiling: single full tile for short sequences, otherwise 128-aligned
    # tiles so lane-dim block shapes stay legal; padded keys are masked, padded query
    # rows are zeroed and sliced off at the end.
    if S <= block_seq:
        blk = S
    else:
        blk = max((block_seq // 128) * 128, 128)
    Sp = -(-S // blk) * blk
    if Sp != S:
        x_p = jnp.pad(x, ((0, 0), (0, Sp - S), (0, 0)))
        mask_p = jnp.pad(mask, ((0, 0), (0, Sp - S)), constant_values=True)
    else:
        x_p, mask_p = x, mask
    n_tiles = Sp // blk

    mask_f = mask_p.astype(jnp.float32)
    mask_k = mask_f.reshape(B, 1, Sp)     # key-padding row
    mask_q = mask_f.reshape(B, Sp, 1)     # query-mask column

    # Parameters (host-side constant folding, free).  Softmax scale folded into Wq/bq
    # before the bf16 cast; weights are bf16 MXU operands, biases / LN params stay f32.
    gamma = params['ln_gamma'].reshape(1, E).astype(jnp.float32)
    beta = params['ln_beta'].reshape(1, E).astype(jnp.float32)
    wq_t = (params['wq'] * scale).T.astype(matmul_dtype)              # (in, out), scaled
    bq = (params['bq'] * scale).reshape(1, E).astype(jnp.float32)
    wk = params['wk'].astype(matmul_dtype)                            # (out, in): K^T = Wk @ xr^T
    bk = params['bk'].reshape(E, 1).astype(jnp.float32)
    wv_t = params['wv'].T.astype(matmul_dtype)                        # (in, out)
    bv = params['bv'].reshape(1, E).astype(jnp.float32)
    wo_h = params['wo'].T.reshape(num_heads, dh, E).astype(matmul_dtype)  # head-major Wo
    bo = params['bo'].reshape(1, E).astype(jnp.float32)

    w_buf = 1 if single_buffer_weights else 2

    # ---- Kernel 1: LN -> ReLU -> Q / K^T / V (head-major) --------------------------
    est1 = (2 * blk * E * 4                       # x tiles (double-buffered)
            + w_buf * 3 * E * E * 2               # Wq^T / Wk / Wv^T (bf16)
            + 2 * 3 * blk * E * 2                 # Q / K^T / V output tiles
            + 8 * 8 * E * 4)                      # LN params + biases (generous)
    ce_proj = pl.CostEstimate(
        flops=2 * 3 * B * Sp * E * E,
        transcendentals=B * Sp,
        bytes_accessed=B * Sp * E * 4 + 3 * E * E * 2 + 3 * B * Sp * E * 2)

    q, kt, v = pl.pallas_call(
        functools.partial(_qkv_projection_kernel, num_heads=num_heads),
        out_shape=(
            jax.ShapeDtypeStruct((B, num_heads, Sp, dh), matmul_dtype),   # Q
            jax.ShapeDtypeStruct((B, num_heads, dh, Sp), matmul_dtype),   # K^T
            jax.ShapeDtypeStruct((B, num_heads, Sp, dh), matmul_dtype),   # V
        ),
        grid=(B, n_tiles),
        in_specs=[
            pl.BlockSpec((None, blk, E), lambda b, r: (b, r, 0)),         # x
            _const_spec((1, E)),                                          # ln gamma
            _const_spec((1, E)),                                          # ln beta
            _const_spec((E, E), single_buffer_weights),                   # Wq^T * scale
            _const_spec((1, E)),                                          # bq * scale
            _const_spec((E, E), single_buffer_weights),                   # Wk
            _const_spec((E, 1)),                                          # bk (column)
            _const_spec((E, E), single_buffer_weights),                   # Wv^T
            _const_spec((1, E)),                                          # bv
        ],
        out_specs=(
            pl.BlockSpec((None, num_heads, blk, dh), lambda b, r: (b, 0, r, 0)),
            pl.BlockSpec((None, num_heads, dh, blk), lambda b, r: (b, 0, 0, r)),
            pl.BlockSpec((None, num_heads, blk, dh), lambda b, r: (b, 0, r, 0)),
        ),
        compiler_params=pltpu.CompilerParams(
            dimension_semantics=("parallel", "parallel"),
            vmem_limit_bytes=_vmem_limit(est1)),
        cost_estimate=ce_proj,
    )(x_p, gamma, beta, wq_t, bq, wk, bk, wv_t, bv)

    # ---- Kernel 2: flash attention + out-proj + query mask + residual --------------
    kv_bytes = 2 * E * Sp * 2                     # K^T + V for one batch row (bf16)
    kv_resident = kv_bytes <= kv_resident_limit_bytes

    if kv_resident:
        # K^T / V live in VMEM for a whole batch row (single-buffered, DMA'd once per
        # b); the kernel slices the current ki tile with pl.ds.
        kt_spec = _spec((None, num_heads, dh, Sp), lambda b, qi, ki: (b, 0, 0, 0),
                        single_buffer_weights)
        v_spec = _spec((None, num_heads, Sp, dh), lambda b, qi, ki: (b, 0, 0, 0),
                       single_buffer_weights)
    else:
        kt_spec = pl.BlockSpec((None, num_heads, dh, blk), lambda b, qi, ki: (b, 0, 0, ki))
        v_spec = pl.BlockSpec((None, num_heads, blk, dh), lambda b, qi, ki: (b, 0, ki, 0))

    est2 = (2 * blk * E * 2                                            # Q tiles
            + (kv_bytes if kv_resident else 2 * 2 * blk * E * 2)       # K^T + V
            + 2 * blk * E * 4 + 2 * blk * E * 4                        # x + out tiles
            + w_buf * E * E * 2                                        # Wo (head-major)
            + blk * E * 4 + 2 * num_heads * blk * 128 * 4              # acc + m/l scratch
            + 8 * 8 * E * 4)
    ce_attn = pl.CostEstimate(
        flops=B * (4 * Sp * Sp * E + 2 * Sp * E * E),
        transcendentals=B * num_heads * Sp * Sp,
        bytes_accessed=3 * B * Sp * E * 2 + 2 * B * Sp * E * 4 + E * E * 2)

    kernel = functools.partial(_attention_kernel, num_heads=num_heads,
                               block_k=blk, kv_resident=kv_resident)
    out = pl.pallas_call(
        kernel,
        out_shape=jax.ShapeDtypeStruct((B, Sp, E), jnp.float32),
        grid=(B, n_tiles, n_tiles),
        in_specs=[
            pl.BlockSpec((None, num_heads, blk, dh), lambda b, qi, ki: (b, 0, qi, 0)),  # Q
            kt_spec,                                                                     # K^T
            v_spec,                                                                      # V
            pl.BlockSpec((None, 1, blk), lambda b, qi, ki: (b, 0, ki)),                  # key mask
            pl.BlockSpec((None, blk, 1), lambda b, qi, ki: (b, qi, 0)),                  # query mask
            pl.BlockSpec((None, blk, E), lambda b, qi, ki: (b, qi, 0)),                  # x (residual)
            _const_spec((num_heads, dh, E), single_buffer_weights),                      # Wo (head-major)
            _const_spec((1, E)),                                                         # bo
        ],
        out_specs=pl.BlockSpec((None, blk, E), lambda b, qi, ki: (b, qi, 0)),
        scratch_shapes=[
            pltpu.VMEM((num_heads, blk, dh), jnp.float32),   # per-head unnormalized acc
            pltpu.VMEM((num_heads, blk, 1), jnp.float32),    # running max m
            pltpu.VMEM((num_heads, blk, 1), jnp.float32),    # running sum l
        ],
        compiler_params=pltpu.CompilerParams(
            dimension_semantics=("parallel", "parallel", "arbitrary"),
            vmem_limit_bytes=_vmem_limit(est2)),
        cost_estimate=ce_attn,
    )(q, kt, v, mask_k, mask_q, x_p, wo_h, bo)

    return out[:, :S, :]


# --------------------------------------------------------------------------------------
# Pure-JAX f32 reference of the PyTorch forward (same masking formulation)
# --------------------------------------------------------------------------------------
def reference(x, mask, p, num_heads):
    B, S, E = x.shape
    dh = E // num_heads
    mean = x.mean(-1, keepdims=True)
    var = ((x - mean) ** 2).mean(-1, keepdims=True)
    xn = (x - mean) / jnp.sqrt(var + LN_EPS) * p['ln_gamma'] + p['ln_beta']
    xr = jnp.maximum(xn, 0.0)
    q = xr @ p['wq'].T + p['bq']
    k = xr @ p['wk'].T + p['bk']
    v = xr @ p['wv'].T + p['bv']
    qh = q.reshape(B, S, num_heads, dh).transpose(0, 2, 1, 3)
    kh = k.reshape(B, S, num_heads, dh).transpose(0, 2, 1, 3)
    vh = v.reshape(B, S, num_heads, dh).transpose(0, 2, 1, 3)
    scores = jnp.einsum('bhqd,bhkd->bhqk', qh, kh) / math.sqrt(dh)
    scores = scores + mask.astype(jnp.float32)[:, None, None, :] * NEG_INF
    attn = jax.nn.softmax(scores, axis=-1)
    o = jnp.einsum('bhqk,bhkd->bhqd', attn, vh)
    o = o.transpose(0, 2, 1, 3).reshape(B, S, E)
    o = o @ p['wo'].T + p['bo']
    o = jnp.where(mask[:, :, None], 0.0, o)
    return x + o


if __name__ == "__main__":
    B, S, E, H = 2, 8, 32, 4   # batch, seq, key_size (= value_size), num_heads

    key = jax.random.PRNGKey(0)
    ks = jax.random.split(key, 10)
    x = jax.random.normal(ks[0], (B, S, E), jnp.float32)

    # key_padding_mask: True == padded; batch 0 fully valid, batch 1 padded from pos 5
    lengths = jnp.array([S, 5])
    mask = jnp.arange(S)[None, :] >= lengths[:, None]

    params = {
        'ln_gamma': jnp.ones((E,), jnp.float32),
        'ln_beta': jnp.zeros((E,), jnp.float32),
        'wq': 0.1 * jax.random.normal(ks[1], (E, E), jnp.float32),
        'wk': 0.1 * jax.random.normal(ks[2], (E, E), jnp.float32),
        'wv': 0.1 * jax.random.normal(ks[3], (E, E), jnp.float32),  # vdim == kdim == E
        'bq': 0.05 * jax.random.normal(ks[4], (E,), jnp.float32),
        'bk': 0.05 * jax.random.normal(ks[5], (E,), jnp.float32),
        'bv': 0.05 * jax.random.normal(ks[6], (E,), jnp.float32),
        'wo': 0.1 * jax.random.normal(ks[7], (E, E), jnp.float32),
        'bo': 0.05 * jax.random.normal(ks[8], (E,), jnp.float32),
    }

    try:
        out = jax.block_until_ready(transformer_layer(x, mask, params, H))
    except Exception:
        # TODO(synk): fallback for jax builds that reject pipeline_mode=pl.Buffered(1)
        # on pallas_call BlockSpecs -- rerun with default double-buffered weights.
        out = jax.block_until_ready(
            transformer_layer(x, mask, params, H, single_buffer_weights=False))

    ref = reference(x, mask, params, H)
    assert out.shape == (B, S, E)
    # TODO(synk): a query row whose keys are ALL padded returns the residual x here
    # (its attention output is zeroed), whereas PyTorch's MultiheadAttention would
    # return NaN for such a row.
    max_err = float(jnp.max(jnp.abs(out - ref)))
    assert max_err < 2e-2, \
        f"Pallas kernel mismatch vs JAX reference (max abs err {max_err})"
    print("KERNEL_OK")
</pallas_src>

<mosaic_0001>
module attributes {stable_mosaic.version = 11 : i64} {
  func.func @_qkv_projection_kernel(%arg0: i32, %arg1: i32, %arg2: memref<1x8x32xf32, #tpu.memory_space<vmem>>, %arg3: memref<1x32xf32, #tpu.memory_space<vmem>>, %arg4: memref<1x32xf32, #tpu.memory_space<vmem>>, %arg5: memref<32x32xbf16, #tpu.memory_space<vmem>>, %arg6: memref<1x32xf32, #tpu.memory_space<vmem>>, %arg7: memref<32x32xbf16, #tpu.memory_space<vmem>>, %arg8: memref<32x1xf32, #tpu.memory_space<vmem>>, %arg9: memref<32x32xbf16, #tpu.memory_space<vmem>>, %arg10: memref<1x32xf32, #tpu.memory_space<vmem>>, %arg11: memref<1x4x8x8xbf16, #tpu.memory_space<vmem>>, %arg12: memref<1x4x8x8xbf16, #tpu.memory_space<vmem>>, %arg13: memref<1x4x8x8xbf16, #tpu.memory_space<vmem>>) attributes {dimension_semantics = [#tpu.dimension_semantics<parallel>, #tpu.dimension_semantics<parallel>], iteration_bounds = array<i64: 2, 1>, scalar_prefetch = 0 : i64, scratch_operands = 0 : i64, tpu.core_type = #tpu.core_type<tc>, window_params = [{transform_indices = @transform_0, window_bounds = array<i64: 1, 8, 32>}, {pipeline_mode = #tpu.pipeline_mode<synchronous>, transform_indices = @transform_1, window_bounds = array<i64: 1, 32>}, {pipeline_mode = #tpu.pipeline_mode<synchronous>, transform_indices = @transform_2, window_bounds = array<i64: 1, 32>}, {pipeline_mode = #tpu.pipeline_mode<synchronous>, transform_indices = @transform_3, window_bounds = array<i64: 32, 32>}, {pipeline_mode = #tpu.pipeline_mode<synchronous>, transform_indices = @transform_4, window_bounds = array<i64: 1, 32>}, {pipeline_mode = #tpu.pipeline_mode<synchronous>, transform_indices = @transform_5, window_bounds = array<i64: 32, 32>}, {pipeline_mode = #tpu.pipeline_mode<synchronous>, transform_indices = @transform_6, window_bounds = array<i64: 32, 1>}, {pipeline_mode = #tpu.pipeline_mode<synchronous>, transform_indices = @transform_7, window_bounds = array<i64: 32, 32>}, {pipeline_mode = #tpu.pipeline_mode<synchronous>, transform_indices = @transform_8, window_bounds = array<i64: 1, 32>}, {transform_indices = @transform_9, window_bounds = array<i64: 1, 4, 8, 8>}, {transform_indices = @transform_10, window_bounds = array<i64: 1, 4, 8, 8>}, {transform_indices = @transform_11, window_bounds = array<i64: 1, 4, 8, 8>}]} {
    %c0 = arith.constant 0 : index
    %c0_0 = arith.constant 0 : index
    %c0_1 = arith.constant 0 : index
    %0 = vector.load %arg2[%c0, %c0_0, %c0_1] : memref<1x8x32xf32, #tpu.memory_space<vmem>>, vector<1x8x32xf32>
    %1 = vector.shape_cast %0 : vector<1x8x32xf32> to vector<8x32xf32>
    %cst = arith.constant dense<0.000000e+00> : vector<8xf32>
    %2 = vector.multi_reduction <add>, %1, %cst [1] : vector<8x32xf32> to vector<8xf32>
    %3 = vector.shape_cast %2 : vector<8xf32> to vector<8x1xf32>
    %cst_2 = arith.constant 3.200000e+01 : f32
    %4 = vector.broadcast %cst_2 : f32 to vector<8x1xf32>
    %5 = arith.divf %3, %4 : vector<8x1xf32>
    %6 = vector.broadcast %5 : vector<8x1xf32> to vector<8x32xf32>
    %7 = arith.subf %1, %6 : vector<8x32xf32>
    %8 = arith.mulf %7, %7 : vector<8x32xf32>
    %cst_3 = arith.constant dense<0.000000e+00> : vector<8xf32>
    %9 = vector.multi_reduction <add>, %8, %cst_3 [1] : vector<8x32xf32> to vector<8xf32>
    %10 = vector.shape_cast %9 : vector<8xf32> to vector<8x1xf32>
    %cst_4 = arith.constant 3.200000e+01 : f32
    %11 = vector.broadcast %cst_4 : f32 to vector<8x1xf32>
    %12 = arith.divf %10, %11 : vector<8x1xf32>
    %13 = vector.broadcast %5 : vector<8x1xf32> to vector<8x32xf32>
    %14 = arith.subf %1, %13 : vector<8x32xf32>
    %cst_5 = arith.constant 9.99999974E-6 : f32
    %15 = vector.broadcast %cst_5 : f32 to vector<8x1xf32>
    %16 = arith.addf %12, %15 : vector<8x1xf32>
    %17 = math.rsqrt %16 : vector<8x1xf32>
    %18 = vector.broadcast %17 : vector<8x1xf32> to vector<8x32xf32>
    %19 = arith.mulf %14, %18 : vector<8x32xf32>
    %c0_6 = arith.constant 0 : index
    %c0_7 = arith.constant 0 : index
    %20 = vector.load %arg3[%c0_6, %c0_7] : memref<1x32xf32, #tpu.memory_space<vmem>>, vector<1x32xf32>
    %21 = vector.broadcast %20 : vector<1x32xf32> to vector<8x32xf32>
    %22 = arith.mulf %19, %21 : vector<8x32xf32>
    %c0_8 = arith.constant 0 : index
    %c0_9 = arith.constant 0 : index
    %23 = vector.load %arg4[%c0_8, %c0_9] : memref<1x32xf32, #tpu.memory_space<vmem>>, vector<1x32xf32>
    %24 = vector.broadcast %23 : vector<1x32xf32> to vector<8x32xf32>
    %25 = arith.addf %22, %24 : vector<8x32xf32>
    %cst_10 = arith.constant 0.000000e+00 : f32
    %26 = vector.broadcast %cst_10 : f32 to vector<8x32xf32>
    %27 = arith.maximumf %25, %26 : vector<8x32xf32>
    %28 = arith.truncf %27 : vector<8x32xf32> to vector<8x32xbf16>
    %29 = tpu.transpose %28, [1, 0] : vector<8x32xbf16> -> vector<32x8xbf16>
    %c0_11 = arith.constant 0 : index
    %c0_12 = arith.constant 0 : index
    %30 = vector.load %arg5[%c0_11, %c0_12] : memref<32x32xbf16, #tpu.memory_space<vmem>>, vector<32x32xbf16>
    %cst_13 = arith.constant dense<0.000000e+00> : vector<8x32xf32>
    %31 = tpu.matmul %28, %30, %cst_13 {dimension_numbers = #tpu.dot_dimension_numbers<[1], [0], [0], [1], [0, 0, 1, 1], [], []>} : vector<8x32xbf16>, vector<32x32xbf16>, vector<8x32xf32> -> vector<8x32xf32>
    %c0_14 = arith.constant 0 : index
    %c0_15 = arith.constant 0 : index
    %32 = vector.load %arg6[%c0_14, %c0_15] : memref<1x32xf32, #tpu.memory_space<vmem>>, vector<1x32xf32>
    %33 = vector.broadcast %32 : vector<1x32xf32> to vector<8x32xf32>
    %34 = arith.addf %31, %33 : vector<8x32xf32>
    %c0_16 = arith.constant 0 : index
    %c0_17 = arith.constant 0 : index
    %35 = vector.load %arg7[%c0_16, %c0_17] : memref<32x32xbf16, #tpu.memory_space<vmem>>, vector<32x32xbf16>
    %cst_18 = arith.constant dense<0.000000e+00> : vector<32x8xf32>
    %36 = tpu.matmul %35, %29, %cst_18 {dimension_numbers = #tpu.dot_dimension_numbers<[1], [0], [0], [1], [0, 0, 1, 1], [], []>} : vector<32x32xbf16>, vector<32x8xbf16>, vector<32x8xf32> -> vector<32x8xf32>
    %c0_19 = arith.constant 0 : index
    %c0_20 = arith.constant 0 : index
    %37 = vector.load %arg8[%c0_19, %c0_20] : memref<32x1xf32, #tpu.memory_space<vmem>>, vector<32x1xf32>
    %38 = vector.broadcast %37 : vector<32x1xf32> to vector<32x8xf32>
    %39 = arith.addf %36, %38 : vector<32x8xf32>
    %c0_21 = arith.constant 0 : index
    %c0_22 = arith.constant 0 : index
    %40 = vector.load %arg9[%c0_21, %c0_22] : memref<32x32xbf16, #tpu.memory_space<vmem>>, vector<32x32xbf16>
    %cst_23 = arith.constant dense<0.000000e+00> : vector<8x32xf32>
    %41 = tpu.matmul %28, %40, %cst_23 {dimension_numbers = #tpu.dot_dimension_numbers<[1], [0], [0], [1], [0, 0, 1, 1], [], []>} : vector<8x32xbf16>, vector<32x32xbf16>, vector<8x32xf32> -> vector<8x32xf32>
    %c0_24 = arith.constant 0 : index
    %c0_25 = arith.constant 0 : index
    %42 = vector.load %arg10[%c0_24, %c0_25] : memref<1x32xf32, #tpu.memory_space<vmem>>, vector<1x32xf32>
    %43 = vector.broadcast %42 : vector<1x32xf32> to vector<8x32xf32>
    %44 = arith.addf %41, %43 : vector<8x32xf32>
    %45 = vector.extract_strided_slice %34 {offsets = [0, 0], sizes = [8, 8], strides = [1, 1]} : vector<8x32xf32> to vector<8x8xf32>
    %46 = arith.truncf %45 : vector<8x8xf32> to vector<8x8xbf16>
    %c0_26 = arith.constant 0 : index
    %c0_27 = arith.constant 0 : index
    %c0_28 = arith.constant 0 : index
    %c0_29 = arith.constant 0 : index
    %47 = vector.load %arg11[%c0_26, %c0_27, %c0_28, %c0_29] : memref<1x4x8x8xbf16, #tpu.memory_space<vmem>>, vector<1x1x8x8xbf16>
    %48 = vector.shape_cast %47 : vector<1x1x8x8xbf16> to vector<8x8xbf16>
    %49 = vector.shape_cast %46 : vector<8x8xbf16> to vector<1x1x8x8xbf16>
    tpu.vector_store %arg11[%c0_26, %c0_27, %c0_28, %c0_29], %49 {strides = array<i32>} : memref<1x4x8x8xbf16, #tpu.memory_space<vmem>>, vector<1x1x8x8xbf16>,
    %50 = vector.extract_strided_slice %39 {offsets = [0, 0], sizes = [8, 8], strides = [1, 1]} : vector<32x8xf32> to vector<8x8xf32>
    %51 = arith.truncf %50 : vector<8x8xf32> to vector<8x8xbf16>
    %c0_30 = arith.constant 0 : index
    %c0_31 = arith.constant 0 : index
    %c0_32 = arith.constant 0 : index
    %c0_33 = arith.constant 0 : index
    %52 = vector.load %arg12[%c0_30, %c0_31, %c0_32, %c0_33] : memref<1x4x8x8xbf16, #tpu.memory_space<vmem>>, vector<1x1x8x8xbf16>
    %53 = vector.shape_cast %52 : vector<1x1x8x8xbf16> to vector<8x8xbf16>
    %54 = vector.shape_cast %51 : vector<8x8xbf16> to vector<1x1x8x8xbf16>
    tpu.vector_store %arg12[%c0_30, %c0_31, %c0_32, %c0_33], %54 {strides = array<i32>} : memref<1x4x8x8xbf16, #tpu.memory_space<vmem>>, vector<1x1x8x8xbf16>,
    %55 = vector.extract_strided_slice %44 {offsets = [0, 0], sizes = [8, 8], strides = [1, 1]} : vector<8x32xf32> to vector<8x8xf32>
    %56 = arith.truncf %55 : vector<8x8xf32> to vector<8x8xbf16>
    %c0_34 = arith.constant 0 : index
    %c0_35 = arith.constant 0 : index
    %c0_36 = arith.constant 0 : index
    %c0_37 = arith.constant 0 : index
    %57 = vector.load %arg13[%c0_34, %c0_35, %c0_36, %c0_37] : memref<1x4x8x8xbf16, #tpu.memory_space<vmem>>, vector<1x1x8x8xbf16>
    %58 = vector.shape_cast %57 : vector<1x1x8x8xbf16> to vector<8x8xbf16>
    %59 = vector.shape_cast %56 : vector<8x8xbf16> to vector<1x1x8x8xbf16>
    tpu.vector_store %arg13[%c0_34, %c0_35, %c0_36, %c0_37], %59 {strides = array<i32>} : memref<1x4x8x8xbf16, #tpu.memory_space<vmem>>, vector<1x1x8x8xbf16>,
    %60 = vector.extract_strided_slice %34 {offsets = [0, 8], sizes = [8, 8], strides = [1, 1]} : vector<8x32xf32> to vector<8x8xf32>
    %61 = arith.truncf %60 : vector<8x8xf32> to vector<8x8xbf16>
    %c0_38 = arith.constant 0 : index
    %c1 = arith.constant 1 : index
    %c0_39 = arith.constant 0 : index
    %c0_40 = arith.constant 0 : index
    %62 = vector.load %arg11[%c0_38, %c1, %c0_39, %c0_40] : memref<1x4x8x8xbf16, #tpu.memory_space<vmem>>, vector<1x1x8x8xbf16>
    %63 = vector.shape_cast %62 : vector<1x1x8x8xbf16> to vector<8x8xbf16>
    %64 = vector.shape_cast %61 : vector<8x8xbf16> to vector<1x1x8x8xbf16>
    tpu.vector_store %arg11[%c0_38, %c1, %c0_39, %c0_40], %64 {strides = array<i32>} : memref<1x4x8x8xbf16, #tpu.memory_space<vmem>>, vector<1x1x8x8xbf16>,
    %65 = vector.extract_strided_slice %39 {offsets = [8, 0], sizes = [8, 8], strides = [1, 1]} : vector<32x8xf32> to vector<8x8xf32>
    %66 = arith.truncf %65 : vector<8x8xf32> to vector<8x8xbf16>
    %c0_41 = arith.constant 0 : index
    %c1_42 = arith.constant 1 : index
    %c0_43 = arith.constant 0 : index
    %c0_44 = arith.constant 0 : index
    %67 = vector.load %arg12[%c0_41, %c1_42, %c0_43, %c0_44] : memref<1x4x8x8xbf16, #tpu.memory_space<vmem>>, vector<1x1x8x8xbf16>
    %68 = vector.shape_cast %67 : vector<1x1x8x8xbf16> to vector<8x8xbf16>
    %69 = vector.shape_cast %66 : vector<8x8xbf16> to vector<1x1x8x8xbf16>
    tpu.vector_store %arg12[%c0_41, %c1_42, %c0_43, %c0_44], %69 {strides = array<i32>} : memref<1x4x8x8xbf16, #tpu.memory_space<vmem>>, vector<1x1x8x8xbf16>,
    %70 = vector.extract_strided_slice %44 {offsets = [0, 8], sizes = [8, 8], strides = [1, 1]} : vector<8x32xf32> to vector<8x8xf32>
    %71 = arith.truncf %70 : vector<8x8xf32> to vector<8x8xbf16>
    %c0_45 = arith.constant 0 : index
    %c1_46 = arith.constant 1 : index
    %c0_47 = arith.constant 0 : index
    %c0_48 = arith.constant 0 : index
    %72 = vector.load %arg13[%c0_45, %c1_46, %c0_47, %c0_48] : memref<1x4x8x8xbf16, #tpu.memory_space<vmem>>, vector<1x1x8x8xbf16>
    %73 = vector.shape_cast %72 : vector<1x1x8x8xbf16> to vector<8x8xbf16>
    %74 = vector.shape_cast %71 : vector<8x8xbf16> to vector<1x1x8x8xbf16>
    tpu.vector_store %arg13[%c0_45, %c1_46, %c0_47, %c0_48], %74 {strides = array<i32>} : memref<1x4x8x8xbf16, #tpu.memory_space<vmem>>, vector<1x1x8x8xbf16>,
    %75 = vector.extract_strided_slice %34 {offsets = [0, 16], sizes = [8, 8], strides = [1, 1]} : vector<8x32xf32> to vector<8x8xf32>
    %76 = arith.truncf %75 : vector<8x8xf32> to vector<8x8xbf16>
    %c0_49 = arith.constant 0 : index
    %c2 = arith.constant 2 : index
    %c0_50 = arith.constant 0 : index
    %c0_51 = arith.constant 0 : index
    %77 = vector.load %arg11[%c0_49, %c2, %c0_50, %c0_51] : memref<1x4x8x8xbf16, #tpu.memory_space<vmem>>, vector<1x1x8x8xbf16>
    %78 = vector.shape_cast %77 : vector<1x1x8x8xbf16> to vector<8x8xbf16>
    %79 = vector.shape_cast %76 : vector<8x8xbf16> to vector<1x1x8x8xbf16>
    tpu.vector_store %arg11[%c0_49, %c2, %c0_50, %c0_51], %79 {strides = array<i32>} : memref<1x4x8x8xbf16, #tpu.memory_space<vmem>>, vector<1x1x8x8xbf16>,
    %80 = vector.extract_strided_slice %39 {offsets = [16, 0], sizes = [8, 8], strides = [1, 1]} : vector<32x8xf32> to vector<8x8xf32>
    %81 = arith.truncf %80 : vector<8x8xf32> to vector<8x8xbf16>
    %c0_52 = arith.constant 0 : index
    %c2_53 = arith.constant 2 : index
    %c0_54 = arith.constant 0 : index
    %c0_55 = arith.constant 0 : index
    %82 = vector.load %arg12[%c0_52, %c2_53, %c0_54, %c0_55] : memref<1x4x8x8xbf16, #tpu.memory_space<vmem>>, vector<1x1x8x8xbf16>
    %83 = vector.shape_cast %82 : vector<1x1x8x8xbf16> to vector<8x8xbf16>
    %84 = vector.shape_cast %81 : vector<8x8xbf16> to vector<1x1x8x8xbf16>
    tpu.vector_store %arg12[%c0_52, %c2_53, %c0_54, %c0_55], %84 {strides = array<i32>} : memref<1x4x8x8xbf16, #tpu.memory_space<vmem>>, vector<1x1x8x8xbf16>,
    %85 = vector.extract_strided_slice %44 {offsets = [0, 16], sizes = [8, 8], strides = [1, 1]} : vector<8x32xf32> to vector<8x8xf32>
    %86 = arith.truncf %85 : vector<8x8xf32> to vector<8x8xbf16>
    %c0_56 = arith.constant 0 : index
    %c2_57 = arith.constant 2 : index
    %c0_58 = arith.constant 0 : index
    %c0_59 = arith.constant 0 : index
    %87 = vector.load %arg13[%c0_56, %c2_57, %c0_58, %c0_59] : memref<1x4x8x8xbf16, #tpu.memory_space<vmem>>, vector<1x1x8x8xbf16>
    %88 = vector.shape_cast %87 : vector<1x1x8x8xbf16> to vector<8x8xbf16>
    %89 = vector.shape_cast %86 : vector<8x8xbf16> to vector<1x1x8x8xbf16>
    tpu.vector_store %arg13[%c0_56, %c2_57, %c0_58, %c0_59], %89 {strides = array<i32>} : memref<1x4x8x8xbf16, #tpu.memory_space<vmem>>, vector<1x1x8x8xbf16>,
    %90 = vector.extract_strided_slice %34 {offsets = [0, 24], sizes = [8, 8], strides = [1, 1]} : vector<8x32xf32> to vector<8x8xf32>
    %91 = arith.truncf %90 : vector<8x8xf32> to vector<8x8xbf16>
    %c0_60 = arith.constant 0 : index
    %c3 = arith.constant 3 : index
    %c0_61 = arith.constant 0 : index
    %c0_62 = arith.constant 0 : index
    %92 = vector.load %arg11[%c0_60, %c3, %c0_61, %c0_62] : memref<1x4x8x8xbf16, #tpu.memory_space<vmem>>, vector<1x1x8x8xbf16>
    %93 = vector.shape_cast %92 : vector<1x1x8x8xbf16> to vector<8x8xbf16>
    %94 = vector.shape_cast %91 : vector<8x8xbf16> to vector<1x1x8x8xbf16>
    tpu.vector_store %arg11[%c0_60, %c3, %c0_61, %c0_62], %94 {strides = array<i32>} : memref<1x4x8x8xbf16, #tpu.memory_space<vmem>>, vector<1x1x8x8xbf16>,
    %95 = vector.extract_strided_slice %39 {offsets = [24, 0], sizes = [8, 8], strides = [1, 1]} : vector<32x8xf32> to vector<8x8xf32>
    %96 = arith.truncf %95 : vector<8x8xf32> to vector<8x8xbf16>
    %c0_63 = arith.constant 0 : index
    %c3_64 = arith.constant 3 : index
    %c0_65 = arith.constant 0 : index
    %c0_66 = arith.constant 0 : index
    %97 = vector.load %arg12[%c0_63, %c3_64, %c0_65, %c0_66] : memref<1x4x8x8xbf16, #tpu.memory_space<vmem>>, vector<1x1x8x8xbf16>
    %98 = vector.shape_cast %97 : vector<1x1x8x8xbf16> to vector<8x8xbf16>
    %99 = vector.shape_cast %96 : vector<8x8xbf16> to vector<1x1x8x8xbf16>
    tpu.vector_store %arg12[%c0_63, %c3_64, %c0_65, %c0_66], %99 {strides = array<i32>} : memref<1x4x8x8xbf16, #tpu.memory_space<vmem>>, vector<1x1x8x8xbf16>,
    %100 = vector.extract_strided_slice %44 {offsets = [0, 24], sizes = [8, 8], strides = [1, 1]} : vector<8x32xf32> to vector<8x8xf32>
    %101 = arith.truncf %100 : vector<8x8xf32> to vector<8x8xbf16>
    %c0_67 = arith.constant 0 : index
    %c3_68 = arith.constant 3 : index
    %c0_69 = arith.constant 0 : index
    %c0_70 = arith.constant 0 : index
    %102 = vector.load %arg13[%c0_67, %c3_68, %c0_69, %c0_70] : memref<1x4x8x8xbf16, #tpu.memory_space<vmem>>, vector<1x1x8x8xbf16>
    %103 = vector.shape_cast %102 : vector<1x1x8x8xbf16> to vector<8x8xbf16>
    %104 = vector.shape_cast %101 : vector<8x8xbf16> to vector<1x1x8x8xbf16>
    tpu.vector_store %arg13[%c0_67, %c3_68, %c0_69, %c0_70], %104 {strides = array<i32>} : memref<1x4x8x8xbf16, #tpu.memory_space<vmem>>, vector<1x1x8x8xbf16>,
    return
  }
  func.func @transform_0(%arg0: i32, %arg1: i32) -> (i32, i32, i32) {
    %c0_i32 = arith.constant 0 : i32
    %c0_i32_0 = arith.constant 0 : i32
    return %arg0, %arg1, %c0_i32 : i32, i32, i32
  }
  func.func @transform_1(%arg0: i32, %arg1: i32) -> (i32, i32) {
    %c0_i32 = arith.constant 0 : i32
    %c0_i32_0 = arith.constant 0 : i32
    %c0_i32_1 = arith.constant 0 : i32
    return %c0_i32, %c0_i32_0 : i32, i32
  }
  func.func @transform_2(%arg0: i32, %arg1: i32) -> (i32, i32) {
    %c0_i32 = arith.constant 0 : i32
    %c0_i32_0 = arith.constant 0 : i32
    %c0_i32_1 = arith.constant 0 : i32
    return %c0_i32, %c0_i32_0 : i32, i32
  }
  func.func @transform_3(%arg0: i32, %arg1: i32) -> (i32, i32) {
    %c0_i32 = arith.constant 0 : i32
    %c0_i32_0 = arith.constant 0 : i32
    %c0_i32_1 = arith.constant 0 : i32
    return %c0_i32, %c0_i32_0 : i32, i32
  }
  func.func @transform_4(%arg0: i32, %arg1: i32) -> (i32, i32) {
    %c0_i32 = arith.constant 0 : i32
    %c0_i32_0 = arith.constant 0 : i32
    %c0_i32_1 = arith.constant 0 : i32
    return %c0_i32, %c0_i32_0 : i32, i32
  }
  func.func @transform_5(%arg0: i32, %arg1: i32) -> (i32, i32) {
    %c0_i32 = arith.constant 0 : i32
    %c0_i32_0 = arith.constant 0 : i32
    %c0_i32_1 = arith.constant 0 : i32
    return %c0_i32, %c0_i32_0 : i32, i32
  }
  func.func @transform_6(%arg0: i32, %arg1: i32) -> (i32, i32) {
    %c0_i32 = arith.constant 0 : i32
    %c0_i32_0 = arith.constant 0 : i32
    %c0_i32_1 = arith.constant 0 : i32
    return %c0_i32, %c0_i32_0 : i32, i32
  }
  func.func @transform_7(%arg0: i32, %arg1: i32) -> (i32, i32) {
    %c0_i32 = arith.constant 0 : i32
    %c0_i32_0 = arith.constant 0 : i32
    %c0_i32_1 = arith.constant 0 : i32
    return %c0_i32, %c0_i32_0 : i32, i32
  }
  func.func @transform_8(%arg0: i32, %arg1: i32) -> (i32, i32) {
    %c0_i32 = arith.constant 0 : i32
    %c0_i32_0 = arith.constant 0 : i32
    %c0_i32_1 = arith.constant 0 : i32
    return %c0_i32, %c0_i32_0 : i32, i32
  }
  func.func @transform_9(%arg0: i32, %arg1: i32) -> (i32, i32, i32, i32) {
    %c0_i32 = arith.constant 0 : i32
    %c0_i32_0 = arith.constant 0 : i32
    %c0_i32_1 = arith.constant 0 : i32
    return %arg0, %c0_i32, %arg1, %c0_i32_0 : i32, i32, i32, i32
  }
  func.func @transform_10(%arg0: i32, %arg1: i32) -> (i32, i32, i32, i32) {
    %c0_i32 = arith.constant 0 : i32
    %c0_i32_0 = arith.constant 0 : i32
    %c0_i32_1 = arith.constant 0 : i32
    return %arg0, %c0_i32, %c0_i32_0, %arg1 : i32, i32, i32, i32
  }
  func.func @transform_11(%arg0: i32, %arg1: i32) -> (i32, i32, i32, i32) {
    %c0_i32 = arith.constant 0 : i32
    %c0_i32_0 = arith.constant 0 : i32
    %c0_i32_1 = arith.constant 0 : i32
    return %arg0, %c0_i32, %arg1, %c0_i32_0 : i32, i32, i32, i32
  }
}

module attributes {stable_mosaic.version = 11 : i64} {
  func.func @_qkv_projection_kernel(%arg0: i32, %arg1: i32, %arg2: memref<1x8x32xf32, #tpu.memory_space<vmem>>, %arg3: memref<1x32xf32, #tpu.memory_space<vmem>>, %arg4: memref<1x32xf32, #tpu.memory_space<vmem>>, %arg5: memref<32x32xbf16, #tpu.memory_space<vmem>>, %arg6: memref<1x32xf32, #tpu.memory_space<vmem>>, %arg7: memref<32x32xbf16, #tpu.memory_space<vmem>>, %arg8: memref<32x1xf32, #tpu.memory_space<vmem>>, %arg9: memref<32x32xbf16, #tpu.memory_space<vmem>>, %arg10: memref<1x32xf32, #tpu.memory_space<vmem>>, %arg11: memref<1x4x8x8xbf16, #tpu.memory_space<vmem>>, %arg12: memref<1x4x8x8xbf16, #tpu.memory_space<vmem>>, %arg13: memref<1x4x8x8xbf16, #tpu.memory_space<vmem>>) attributes {dimension_semantics = [#tpu.dimension_semantics<parallel>, #tpu.dimension_semantics<parallel>], iteration_bounds = array<i64: 2, 1>, scalar_prefetch = 0 : i64, scratch_operands = 0 : i64, tpu.core_type = #tpu.core_type<tc>, window_params = [{transform_indices = @transform_0, window_bounds = array<i64: 1, 8, 32>}, {pipeline_mode = #tpu.pipeline_mode<synchronous>, transform_indices = @transform_1, window_bounds = array<i64: 1, 32>}, {pipeline_mode = #tpu.pipeline_mode<synchronous>, transform_indices = @transform_2, window_bounds = array<i64: 1, 32>}, {pipeline_mode = #tpu.pipeline_mode<synchronous>, transform_indices = @transform_3, window_bounds = array<i64: 32, 32>}, {pipeline_mode = #tpu.pipeline_mode<synchronous>, transform_indices = @transform_4, window_bounds = array<i64: 1, 32>}, {pipeline_mode = #tpu.pipeline_mode<synchronous>, transform_indices = @transform_5, window_bounds = array<i64: 32, 32>}, {pipeline_mode = #tpu.pipeline_mode<synchronous>, transform_indices = @transform_6, window_bounds = array<i64: 32, 1>}, {pipeline_mode = #tpu.pipeline_mode<synchronous>, transform_indices = @transform_7, window_bounds = array<i64: 32, 32>}, {pipeline_mode = #tpu.pipeline_mode<synchronous>, transform_indices = @transform_8, window_bounds = array<i64: 1, 32>}, {transform_indices = @transform_9, window_bounds = array<i64: 1, 4, 8, 8>}, {transform_indices = @transform_10, window_bounds = array<i64: 1, 4, 8, 8>}, {transform_indices = @transform_11, window_bounds = array<i64: 1, 4, 8, 8>}]} {
    %c0 = arith.constant 0 : index
    %c0_0 = arith.constant 0 : index
    %c0_1 = arith.constant 0 : index
    %0 = vector.load %arg2[%c0, %c0_0, %c0_1] : memref<1x8x32xf32, #tpu.memory_space<vmem>>, vector<1x8x32xf32>
    %1 = vector.shape_cast %0 : vector<1x8x32xf32> to vector<8x32xf32>
    %cst = arith.constant dense<0.000000e+00> : vector<8xf32>
    %2 = vector.multi_reduction <add>, %1, %cst [1] : vector<8x32xf32> to vector<8xf32>
    %3 = vector.shape_cast %2 : vector<8xf32> to vector<8x1xf32>
    %cst_2 = arith.constant 3.200000e+01 : f32
    %4 = vector.broadcast %cst_2 : f32 to vector<8x1xf32>
    %5 = arith.divf %3, %4 : vector<8x1xf32>
    %6 = vector.broadcast %5 : vector<8x1xf32> to vector<8x32xf32>
    %7 = arith.subf %1, %6 : vector<8x32xf32>
    %8 = arith.mulf %7, %7 : vector<8x32xf32>
    %cst_3 = arith.constant dense<0.000000e+00> : vector<8xf32>
    %9 = vector.multi_reduction <add>, %8, %cst_3 [1] : vector<8x32xf32> to vector<8xf32>
    %10 = vector.shape_cast %9 : vector<8xf32> to vector<8x1xf32>
    %cst_4 = arith.constant 3.200000e+01 : f32
    %11 = vector.broadcast %cst_4 : f32 to vector<8x1xf32>
    %12 = arith.divf %10, %11 : vector<8x1xf32>
    %13 = vector.broadcast %5 : vector<8x1xf32> to vector<8x32xf32>
    %14 = arith.subf %1, %13 : vector<8x32xf32>
    %cst_5 = arith.constant 9.99999974E-6 : f32
    %15 = vector.broadcast %cst_5 : f32 to vector<8x1xf32>
    %16 = arith.addf %12, %15 : vector<8x1xf32>
    %17 = math.rsqrt %16 : vector<8x1xf32>
    %18 = vector.broadcast %17 : vector<8x1xf32> to vector<8x32xf32>
    %19 = arith.mulf %14, %18 : vector<8x32xf32>
    %c0_6 = arith.constant 0 : index
    %c0_7 = arith.constant 0 : index
    %20 = vector.load %arg3[%c0_6, %c0_7] : memref<1x32xf32, #tpu.memory_space<vmem>>, vector<1x32xf32>
    %21 = vector.broadcast %20 : vector<1x32xf32> to vector<8x32xf32>
    %22 = arith.mulf %19, %21 : vector<8x32xf32>
    %c0_8 = arith.constant 0 : index
    %c0_9 = arith.constant 0 : index
    %23 = vector.load %arg4[%c0_8, %c0_9] : memref<1x32xf32, #tpu.memory_space<vmem>>, vector<1x32xf32>
    %24 = vector.broadcast %23 : vector<1x32xf32> to vector<8x32xf32>
    %25 = arith.addf %22, %24 : vector<8x32xf32>
    %cst_10 = arith.constant 0.000000e+00 : f32
    %26 = vector.broadcast %cst_10 : f32 to vector<8x32xf32>
    %27 = arith.maximumf %25, %26 : vector<8x32xf32>
    %28 = arith.truncf %27 : vector<8x32xf32> to vector<8x32xbf16>
    %29 = tpu.transpose %28, [1, 0] : vector<8x32xbf16> -> vector<32x8xbf16>
    %c0_11 = arith.constant 0 : index
    %c0_12 = arith.constant 0 : index
    %30 = vector.load %arg5[%c0_11, %c0_12] : memref<32x32xbf16, #tpu.memory_space<vmem>>, vector<32x32xbf16>
    %cst_13 = arith.constant dense<0.000000e+00> : vector<8x32xf32>
    %31 = tpu.matmul %28, %30, %cst_13 {dimension_numbers = #tpu.dot_dimension_numbers<[1], [0], [0], [1], [0, 0, 1, 1], [], []>} : vector<8x32xbf16>, vector<32x32xbf16>, vector<8x32xf32> -> vector<8x32xf32>
    %c0_14 = arith.constant 0 : index
    %c0_15 = arith.constant 0 : index
    %32 = vector.load %arg6[%c0_14, %c0_15] : memref<1x32xf32, #tpu.memory_space<vmem>>, vector<1x32xf32>
    %33 = vector.broadcast %32 : vector<1x32xf32> to vector<8x32xf32>
    %34 = arith.addf %31, %33 : vector<8x32xf32>
    %c0_16 = arith.constant 0 : index
    %c0_17 = arith.constant 0 : index
    %35 = vector.load %arg7[%c0_16, %c0_17] : memref<32x32xbf16, #tpu.memory_space<vmem>>, vector<32x32xbf16>
    %cst_18 = arith.constant dense<0.000000e+00> : vector<32x8xf32>
    %36 = tpu.matmul %35, %29, %cst_18 {dimension_numbers = #tpu.dot_dimension_numbers<[1], [0], [0], [1], [0, 0, 1, 1], [], []>} : vector<32x32xbf16>, vector<32x8xbf16>, vector<32x8xf32> -> vector<32x8xf32>
    %c0_19 = arith.constant 0 : index
    %c0_20 = arith.constant 0 : index
    %37 = vector.load %arg8[%c0_19, %c0_20] : memref<32x1xf32, #tpu.memory_space<vmem>>, vector<32x1xf32>
    %38 = vector.broadcast %37 : vector<32x1xf32> to vector<32x8xf32>
    %39 = arith.addf %36, %38 : vector<32x8xf32>
    %c0_21 = arith.constant 0 : index
    %c0_22 = arith.constant 0 : index
    %40 = vector.load %arg9[%c0_21, %c0_22] : memref<32x32xbf16, #tpu.memory_space<vmem>>, vector<32x32xbf16>
    %cst_23 = arith.constant dense<0.000000e+00> : vector<8x32xf32>
    %41 = tpu.matmul %28, %40, %cst_23 {dimension_numbers = #tpu.dot_dimension_numbers<[1], [0], [0], [1], [0, 0, 1, 1], [], []>} : vector<8x32xbf16>, vector<32x32xbf16>, vector<8x32xf32> -> vector<8x32xf32>
    %c0_24 = arith.constant 0 : index
    %c0_25 = arith.constant 0 : index
    %42 = vector.load %arg10[%c0_24, %c0_25] : memref<1x32xf32, #tpu.memory_space<vmem>>, vector<1x32xf32>
    %43 = vector.broadcast %42 : vector<1x32xf32> to vector<8x32xf32>
    %44 = arith.addf %41, %43 : vector<8x32xf32>
    %45 = vector.extract_strided_slice %34 {offsets = [0, 0], sizes = [8, 8], strides = [1, 1]} : vector<8x32xf32> to vector<8x8xf32>
    %46 = arith.truncf %45 : vector<8x8xf32> to vector<8x8xbf16>
    %c0_26 = arith.constant 0 : index
    %c0_27 = arith.constant 0 : index
    %c0_28 = arith.constant 0 : index
    %c0_29 = arith.constant 0 : index
    %47 = vector.load %arg11[%c0_26, %c0_27, %c0_28, %c0_29] : memref<1x4x8x8xbf16, #tpu.memory_space<vmem>>, vector<1x1x8x8xbf16>
    %48 = vector.shape_cast %47 : vector<1x1x8x8xbf16> to vector<8x8xbf16>
    %49 = vector.shape_cast %46 : vector<8x8xbf16> to vector<1x1x8x8xbf16>
    tpu.vector_store %arg11[%c0_26, %c0_27, %c0_28, %c0_29], %49 {strides = array<i32>} : memref<1x4x8x8xbf16, #tpu.memory_space<vmem>>, vector<1x1x8x8xbf16>,
    %50 = vector.extract_strided_slice %39 {offsets = [0, 0], sizes = [8, 8], strides = [1, 1]} : vector<32x8xf32> to vector<8x8xf32>
    %51 = arith.truncf %50 : vector<8x8xf32> to vector<8x8xbf16>
    %c0_30 = arith.constant 0 : index
    %c0_31 = arith.constant 0 : index
    %c0_32 = arith.constant 0 : index
    %c0_33 = arith.constant 0 : index
    %52 = vector.load %arg12[%c0_30, %c0_31, %c0_32, %c0_33] : memref<1x4x8x8xbf16, #tpu.memory_space<vmem>>, vector<1x1x8x8xbf16>
    %53 = vector.shape_cast %52 : vector<1x1x8x8xbf16> to vector<8x8xbf16>
    %54 = vector.shape_cast %51 : vector<8x8xbf16> to vector<1x1x8x8xbf16>
    tpu.vector_store %arg12[%c0_30, %c0_31, %c0_32, %c0_33], %54 {strides = array<i32>} : memref<1x4x8x8xbf16, #tpu.memory_space<vmem>>, vector<1x1x8x8xbf16>,
    %55 = vector.extract_strided_slice %44 {offsets = [0, 0], sizes = [8, 8], strides = [1, 1]} : vector<8x32xf32> to vector<8x8xf32>
    %56 = arith.truncf %55 : vector<8x8xf32> to vector<8x8xbf16>
    %c0_34 = arith.constant 0 : index
    %c0_35 = arith.constant 0 : index
    %c0_36 = arith.constant 0 : index
    %c0_37 = arith.constant 0 : index
    %57 = vector.load %arg13[%c0_34, %c0_35, %c0_36, %c0_37] : memref<1x4x8x8xbf16, #tpu.memory_space<vmem>>, vector<1x1x8x8xbf16>
    %58 = vector.shape_cast %57 : vector<1x1x8x8xbf16> to vector<8x8xbf16>
    %59 = vector.shape_cast %56 : vector<8x8xbf16> to vector<1x1x8x8xbf16>
    tpu.vector_store %arg13[%c0_34, %c0_35, %c0_36, %c0_37], %59 {strides = array<i32>} : memref<1x4x8x8xbf16, #tpu.memory_space<vmem>>, vector<1x1x8x8xbf16>,
    %60 = vector.extract_strided_slice %34 {offsets = [0, 8], sizes = [8, 8], strides = [1, 1]} : vector<8x32xf32> to vector<8x8xf32>
    %61 = arith.truncf %60 : vector<8x8xf32> to vector<8x8xbf16>
    %c0_38 = arith.constant 0 : index
    %c1 = arith.constant 1 : index
    %c0_39 = arith.constant 0 : index
    %c0_40 = arith.constant 0 : index
    %62 = vector.load %arg11[%c0_38, %c1, %c0_39, %c0_40] : memref<1x4x8x8xbf16, #tpu.memory_space<vmem>>, vector<1x1x8x8xbf16>
    %63 = vector.shape_cast %62 : vector<1x1x8x8xbf16> to vector<8x8xbf16>
    %64 = vector.shape_cast %61 : vector<8x8xbf16> to vector<1x1x8x8xbf16>
    tpu.vector_store %arg11[%c0_38, %c1, %c0_39, %c0_40], %64 {strides = array<i32>} : memref<1x4x8x8xbf16, #tpu.memory_space<vmem>>, vector<1x1x8x8xbf16>,
    %65 = vector.extract_strided_slice %39 {offsets = [8, 0], sizes = [8, 8], strides = [1, 1]} : vector<32x8xf32> to vector<8x8xf32>
    %66 = arith.truncf %65 : vector<8x8xf32> to vector<8x8xbf16>
    %c0_41 = arith.constant 0 : index
    %c1_42 = arith.constant 1 : index
    %c0_43 = arith.constant 0 : index
    %c0_44 = arith.constant 0 : index
    %67 = vector.load %arg12[%c0_41, %c1_42, %c0_43, %c0_44] : memref<1x4x8x8xbf16, #tpu.memory_space<vmem>>, vector<1x1x8x8xbf16>
    %68 = vector.shape_cast %67 : vector<1x1x8x8xbf16> to vector<8x8xbf16>
    %69 = vector.shape_cast %66 : vector<8x8xbf16> to vector<1x1x8x8xbf16>
    tpu.vector_store %arg12[%c0_41, %c1_42, %c0_43, %c0_44], %69 {strides = array<i32>} : memref<1x4x8x8xbf16, #tpu.memory_space<vmem>>, vector<1x1x8x8xbf16>,
    %70 = vector.extract_strided_slice %44 {offsets = [0, 8], sizes = [8, 8], strides = [1, 1]} : vector<8x32xf32> to vector<8x8xf32>
    %71 = arith.truncf %70 : vector<8x8xf32> to vector<8x8xbf16>
    %c0_45 = arith.constant 0 : index
    %c1_46 = arith.constant 1 : index
    %c0_47 = arith.constant 0 : index
    %c0_48 = arith.constant 0 : index
    %72 = vector.load %arg13[%c0_45, %c1_46, %c0_47, %c0_48] : memref<1x4x8x8xbf16, #tpu.memory_space<vmem>>, vector<1x1x8x8xbf16>
    %73 = vector.shape_cast %72 : vector<1x1x8x8xbf16> to vector<8x8xbf16>
    %74 = vector.shape_cast %71 : vector<8x8xbf16> to vector<1x1x8x8xbf16>
    tpu.vector_store %arg13[%c0_45, %c1_46, %c0_47, %c0_48], %74 {strides = array<i32>} : memref<1x4x8x8xbf16, #tpu.memory_space<vmem>>, vector<1x1x8x8xbf16>,
    %75 = vector.extract_strided_slice %34 {offsets = [0, 16], sizes = [8, 8], strides = [1, 1]} : vector<8x32xf32> to vector<8x8xf32>
    %76 = arith.truncf %75 : vector<8x8xf32> to vector<8x8xbf16>
    %c0_49 = arith.constant 0 : index
    %c2 = arith.constant 2 : index
    %c0_50 = arith.constant 0 : index
    %c0_51 = arith.constant 0 : index
    %77 = vector.load %arg11[%c0_49, %c2, %c0_50, %c0_51] : memref<1x4x8x8xbf16, #tpu.memory_space<vmem>>, vector<1x1x8x8xbf16>
    %78 = vector.shape_cast %77 : vector<1x1x8x8xbf16> to vector<8x8xbf16>
    %79 = vector.shape_cast %76 : vector<8x8xbf16> to vector<1x1x8x8xbf16>
    tpu.vector_store %arg11[%c0_49, %c2, %c0_50, %c0_51], %79 {strides = array<i32>} : memref<1x4x8x8xbf16, #tpu.memory_space<vmem>>, vector<1x1x8x8xbf16>,
    %80 = vector.extract_strided_slice %39 {offsets = [16, 0], sizes = [8, 8], strides = [1, 1]} : vector<32x8xf32> to vector<8x8xf32>
    %81 = arith.truncf %80 : vector<8x8xf32> to vector<8x8xbf16>
    %c0_52 = arith.constant 0 : index
    %c2_53 = arith.constant 2 : index
    %c0_54 = arith.constant 0 : index
    %c0_55 = arith.constant 0 : index
    %82 = vector.load %arg12[%c0_52, %c2_53, %c0_54, %c0_55] : memref<1x4x8x8xbf16, #tpu.memory_space<vmem>>, vector<1x1x8x8xbf16>
    %83 = vector.shape_cast %82 : vector<1x1x8x8xbf16> to vector<8x8xbf16>
    %84 = vector.shape_cast %81 : vector<8x8xbf16> to vector<1x1x8x8xbf16>
    tpu.vector_store %arg12[%c0_52, %c2_53, %c0_54, %c0_55], %84 {strides = array<i32>} : memref<1x4x8x8xbf16, #tpu.memory_space<vmem>>, vector<1x1x8x8xbf16>,
    %85 = vector.extract_strided_slice %44 {offsets = [0, 16], sizes = [8, 8], strides = [1, 1]} : vector<8x32xf32> to vector<8x8xf32>
    %86 = arith.truncf %85 : vector<8x8xf32> to vector<8x8xbf16>
    %c0_56 = arith.constant 0 : index
    %c2_57 = arith.constant 2 : index
    %c0_58 = arith.constant 0 : index
    %c0_59 = arith.constant 0 : index
    %87 = vector.load %arg13[%c0_56, %c2_57, %c0_58, %c0_59] : memref<1x4x8x8xbf16, #tpu.memory_space<vmem>>, vector<1x1x8x8xbf16>
    %88 = vector.shape_cast %87 : vector<1x1x8x8xbf16> to vector<8x8xbf16>
    %89 = vector.shape_cast %86 : vector<8x8xbf16> to vector<1x1x8x8xbf16>
    tpu.vector_store %arg13[%c0_56, %c2_57, %c0_58, %c0_59], %89 {strides = array<i32>} : memref<1x4x8x8xbf16, #tpu.memory_space<vmem>>, vector<1x1x8x8xbf16>,
    %90 = vector.extract_strided_slice %34 {offsets = [0, 24], sizes = [8, 8], strides = [1, 1]} : vector<8x32xf32> to vector<8x8xf32>
    %91 = arith.truncf %90 : vector<8x8xf32> to vector<8x8xbf16>
    %c0_60 = arith.constant 0 : index
    %c3 = arith.constant 3 : index
    %c0_61 = arith.constant 0 : index
    %c0_62 = arith.constant 0 : index
    %92 = vector.load %arg11[%c0_60, %c3, %c0_61, %c0_62] : memref<1x4x8x8xbf16, #tpu.memory_space<vmem>>, vector<1x1x8x8xbf16>
    %93 = vector.shape_cast %92 : vector<1x1x8x8xbf16> to vector<8x8xbf16>
    %94 = vector.shape_cast %91 : vector<8x8xbf16> to vector<1x1x8x8xbf16>
    tpu.vector_store %arg11[%c0_60, %c3, %c0_61, %c0_62], %94 {strides = array<i32>} : memref<1x4x8x8xbf16, #tpu.memory_space<vmem>>, vector<1x1x8x8xbf16>,
    %95 = vector.extract_strided_slice %39 {offsets = [24, 0], sizes = [8, 8], strides = [1, 1]} : vector<32x8xf32> to vector<8x8xf32>
    %96 = arith.truncf %95 : vector<8x8xf32> to vector<8x8xbf16>
    %c0_63 = arith.constant 0 : index
    %c3_64 = arith.constant 3 : index
    %c0_65 = arith.constant 0 : index
    %c0_66 = arith.constant 0 : index
    %97 = vector.load %arg12[%c0_63, %c3_64, %c0_65, %c0_66] : memref<1x4x8x8xbf16, #tpu.memory_space<vmem>>, vector<1x1x8x8xbf16>
    %98 = vector.shape_cast %97 : vector<1x1x8x8xbf16> to vector<8x8xbf16>
    %99 = vector.shape_cast %96 : vector<8x8xbf16> to vector<1x1x8x8xbf16>
    tpu.vector_store %arg12[%c0_63, %c3_64, %c0_65, %c0_66], %99 {strides = array<i32>} : memref<1x4x8x8xbf16, #tpu.memory_space<vmem>>, vector<1x1x8x8xbf16>,
    %100 = vector.extract_strided_slice %44 {offsets = [0, 24], sizes = [8, 8], strides = [1, 1]} : vector<8x32xf32> to vector<8x8xf32>
    %101 = arith.truncf %100 : vector<8x8xf32> to vector<8x8xbf16>
    %c0_67 = arith.constant 0 : index
    %c3_68 = arith.constant 3 : index
    %c0_69 = arith.constant 0 : index
    %c0_70 = arith.constant 0 : index
    %102 = vector.load %arg13[%c0_67, %c3_68, %c0_69, %c0_70] : memref<1x4x8x8xbf16, #tpu.memory_space<vmem>>, vector<1x1x8x8xbf16>
    %103 = vector.shape_cast %102 : vector<1x1x8x8xbf16> to vector<8x8xbf16>
    %104 = vector.shape_cast %101 : vector<8x8xbf16> to vector<1x1x8x8xbf16>
    tpu.vector_store %arg13[%c0_67, %c3_68, %c0_69, %c0_70], %104 {strides = array<i32>} : memref<1x4x8x8xbf16, #tpu.memory_space<vmem>>, vector<1x1x8x8xbf16>,
    return
  }
  func.func @transform_0(%arg0: i32, %arg1: i32) -> (i32, i32, i32) {
    %c0_i32 = arith.constant 0 : i32
    %c0_i32_0 = arith.constant 0 : i32
    return %arg0, %arg1, %c0_i32 : i32, i32, i32
  }
  func.func @transform_1(%arg0: i32, %arg1: i32) -> (i32, i32) {
    %c0_i32 = arith.constant 0 : i32
    %c0_i32_0 = arith.constant 0 : i32
    %c0_i32_1 = arith.constant 0 : i32
    return %c0_i32, %c0_i32_0 : i32, i32
  }
  func.func @transform_2(%arg0: i32, %arg1: i32) -> (i32, i32) {
    %c0_i32 = arith.constant 0 : i32
    %c0_i32_0 = arith.constant 0 : i32
    %c0_i32_1 = arith.constant 0 : i32
    return %c0_i32, %c0_i32_0 : i32, i32
  }
  func.func @transform_3(%arg0: i32, %arg1: i32) -> (i32, i32) {
    %c0_i32 = arith.constant 0 : i32
    %c0_i32_0 = arith.constant 0 : i32
    %c0_i32_1 = arith.constant 0 : i32
    return %c0_i32, %c0_i32_0 : i32, i32
  }
  func.func @transform_4(%arg0: i32, %arg1: i32) -> (i32, i32) {
    %c0_i32 = arith.constant 0 : i32
    %c0_i32_0 = arith.constant 0 : i32
    %c0_i32_1 = arith.constant 0 : i32
    return %c0_i32, %c0_i32_0 : i32, i32
  }
  func.func @transform_5(%arg0: i32, %arg1: i32) -> (i32, i32) {
    %c0_i32 = arith.constant 0 : i32
    %c0_i32_0 = arith.constant 0 : i32
    %c0_i32_1 = arith.constant 0 : i32
    return %c0_i32, %c0_i32_0 : i32, i32
  }
  func.func @transform_6(%arg0: i32, %arg1: i32) -> (i32, i32) {
    %c0_i32 = arith.constant 0 : i32
    %c0_i32_0 = arith.constant 0 : i32
    %c0_i32_1 = arith.constant 0 : i32
    return %c0_i32, %c0_i32_0 : i32, i32
  }
  func.func @transform_7(%arg0: i32, %arg1: i32) -> (i32, i32) {
    %c0_i32 = arith.constant 0 : i32
    %c0_i32_0 = arith.constant 0 : i32
    %c0_i32_1 = arith.constant 0 : i32
    return %c0_i32, %c0_i32_0 : i32, i32
  }
  func.func @transform_8(%arg0: i32, %arg1: i32) -> (i32, i32) {
    %c0_i32 = arith.constant 0 : i32
    %c0_i32_0 = arith.constant 0 : i32
    %c0_i32_1 = arith.constant 0 : i32
    return %c0_i32, %c0_i32_0 : i32, i32
  }
  func.func @transform_9(%arg0: i32, %arg1: i32) -> (i32, i32, i32, i32) {
    %c0_i32 = arith.constant 0 : i32
    %c0_i32_0 = arith.constant 0 : i32
    %c0_i32_1 = arith.constant 0 : i32
    return %arg0, %c0_i32, %arg1, %c0_i32_0 : i32, i32, i32, i32
  }
  func.func @transform_10(%arg0: i32, %arg1: i32) -> (i32, i32, i32, i32) {
    %c0_i32 = arith.constant 0 : i32
    %c0_i32_0 = arith.constant 0 : i32
    %c0_i32_1 = arith.constant 0 : i32
    return %arg0, %c0_i32, %c0_i32_0, %arg1 : i32, i32, i32, i32
  }
  func.func @transform_11(%arg0: i32, %arg1: i32) -> (i32, i32, i32, i32) {
    %c0_i32 = arith.constant 0 : i32
    %c0_i32_0 = arith.constant 0 : i32
    %c0_i32_1 = arith.constant 0 : i32
    return %arg0, %c0_i32, %arg1, %c0_i32_0 : i32, i32, i32, i32
  }
}

</mosaic_0001>

<llo_original>
// kernel: tpu_custom_call.1
$region0: #{tpu_custom_call.1}
  #allocation0 [shape = 'u32[]', space=smem, size = 0x4, offset = 0x4, fixed_abs, tag = 'smem constant byte address 0x4 - core index']
  #allocation1 [shape = 'u32[144,128]{1,0:T(1,128)}', space=vmem, size = 0x12000, scoped, tag = 'internal scratch']
  %s0 = inlined_call_operand.vmem [shape: f32[2,8,32], index: 0, kind: input, shape index: {}]
  %s1 = inlined_call_operand.vmem [shape: f32[1,32], index: 1, kind: input, shape index: {}]
  %s2 = inlined_call_operand.vmem [shape: f32[1,32], index: 2, kind: input, shape index: {}]
  %s3 = inlined_call_operand.vmem [shape: bf16[32,32], index: 3, kind: input, shape index: {}]
  %s4 = inlined_call_operand.vmem [shape: f32[1,32], index: 4, kind: input, shape index: {}]
  %s5 = inlined_call_operand.hbm [shape: bf16[32,32], index: 5, kind: input, shape index: {}]
  %s6 = inlined_call_operand.vmem [shape: f32[32,1], index: 6, kind: input, shape index: {}]
  %s7 = inlined_call_operand.hbm [shape: bf16[32,32], index: 7, kind: input, shape index: {}]
  %s8 = inlined_call_operand.vmem [shape: f32[1,32], index: 8, kind: input, shape index: {}]
  %s9 = inlined_call_operand.hbm [shape: bf16[2,4,8,8], index: 9, kind: output, shape index: {0}]
  %s10 = inlined_call_operand.hbm [shape: bf16[2,4,8,8], index: 10, kind: output, shape index: {1}]
  %s11 = inlined_call_operand.hbm [shape: bf16[2,4,8,8], index: 11, kind: output, shape index: {2}]
  %12 = xla_tuple %s9, %s10, %s11
  %s13 = sld [smem:[#allocation0]]
  $region93: #{tpu_custom_call.1} parent=0
    _
  %s15 = ssub.s32 1, %s13
  %s16 = scalar_select 0, %s15, %s13
  $region1: #{tpu_custom_call.1} parent=0
    #allocation2 [shape = 'u8[8192]{0}', space=vmem, size = 0x2000, scoped, tag = 'input window, operand 5, single buffered']
    #allocation3 [shape = 's32[2]{0}', space=sflag, size = 0x8, scoped, tag = 'scoped memory for tpu_custom_call.1']
    #allocation4 [shape = 's32[2]{0}', space=sflag, size = 0x8, scoped, tag = 'scoped memory for tpu_custom_call.1']
    #allocation5 [shape = 'u8[8192]{0}', space=vmem, size = 0x2000, scoped, tag = 'input window, operand 7, single buffered']
    #allocation6 [shape = 's32[1]{0}', space=sflag, size = 0x4, scoped, tag = 'scoped memory for tpu_custom_call.1']
    #allocation7 [shape = 'u8[16384]{0}', space=vmem, size = 0x4000, scoped, tag = 'output window, operand 0']
    #allocation8 [shape = 'u8[16384]{0}', space=vmem, size = 0x4000, scoped, tag = 'output window, operand 1']
    #allocation9 [shape = 's32[2]{0}', space=sflag, size = 0x8, scoped, tag = 'scoped memory for tpu_custom_call.1']
    #allocation10 [shape = 'u8[16384]{0}', space=vmem, size = 0x4000, scoped, tag = 'output window, operand 2']
    %17 = vsyncpa [#allocation3], 0
    %18 = vsyncpa [#allocation6], 0
    %19 = vsyncpa [#allocation4], 0
    %s20 = scalar_lea.sflag [#allocation4], 1
    %21 = vsyncpa %s20, 0
    %22 = vsyncpa [#allocation9], 0
    %s23 = scalar_lea.sflag [#allocation9], 1
    %24 = vsyncpa %s23, 0
    loop: start=0, step=1, limit=4
    $region2: #{tpu_custom_call.1} parent=1 // loop_pre_header
      _
    $region3: #{tpu_custom_call.1} parent=1 // loop_header
      %s26 = sphi 0, %s30
      %p27 = scmp.ge.s32.totalorder %s26, 4
      %s33 = sphi 0, %s45
      %s34 = sphi 0, %s41
      %s35 = sphi 0, %s33
      %s36 = sphi 0, %s34
      %s37 = sphi 0, %s35
      %s38 = sphi 0, %s36
      %s50 = sphi 0, %s52
      %s53 = sphi 0, %s50
      %s54 = sphi 0, %s53
      %s70 = sphi 0, %s54
      %s74 = sphi 0, %s74
      %s76 = sphi 0, %s74
      %s77 = sphi 0, %s76
      %s91 = sphi 0, %s77
      %s95 = sphi 0, %s95
      %s97 = sphi 0, %s95
      %s98 = sphi 0, %s97
      %s112 = sphi 0, %s98
      %s116 = sphi 0, %s116
      %s118 = sphi 0, %s116
      %s119 = sphi 0, %s118
      %s133 = sphi 0, %s119
      %s137 = sphi 0, %s137
      %s139 = sphi 0, %s137
      %s140 = sphi 0, %s139
      %s154 = sphi 0, %s140
      %s158 = sphi 0, %s158
      %s160 = sphi 0, %s158
      %s161 = sphi 0, %s160
      %s175 = sphi 0, %s161
      %s179 = sphi 0, %s179
      %s181 = sphi 0, %s179
      %s182 = sphi 0, %s181
      %s196 = sphi 0, %s182
      %s200 = sphi 0, %s200
      %s202 = sphi 0, %s200
      %s203 = sphi 0, %s202
      %s217 = sphi 0, %s203
      %s221 = sphi 0, %s221
      %s223 = sphi 0, %s221
      %s224 = sphi 0, %s223
      %s238 = sphi 0, %s224
      %s246 = sphi 0, %s248
      %s249 = sphi 0, %s246
      %s250 = sphi 0, %s249
      %s266 = sphi 0, %s250
      %s274 = sphi 0, %s276
      %s277 = sphi 0, %s274
      %s278 = sphi 0, %s277
      %s294 = sphi 0, %s278
      %s302 = sphi 0, %s304
      %s305 = sphi 0, %s302
      %s306 = sphi 0, %s305
      %s322 = sphi 0, %s306
    $region4: #{tpu_custom_call.1} parent=1 // loop_header_branch
      %29 = sbr.rel (%p27) target = $region8
    $region5: #{tpu_custom_call.1} parent=1 // loop_body
      %s31 = ssub.s32 %s26, 1
      %s32 = ssub.s32 %s26, 2
      %s39 = sadd.s32 1, %s34
      %p40 = scmp.ge.s32.totalorder %s39, 1
      %s41 = scalar_select %p40, 0, %s39
      %s42 = sadd.s32 1, %s33
      %s43 = scalar_select %p40, %s42, %s33
      %p44 = scmp.ge.s32.totalorder %s43, 2
      %s45 = scalar_select %p44, 0, %s43
      %s46 = ssub.s32 %s33, %s45
      %s47 = ssub.s32 %s34, %s41
      %s48 = sor.u32 %s46, %s47
      %p49 = scmp.eq.s32.totalorder %s48, 0
      %s51 = sadd.s32 %s50, 1
      %s52 = scalar_select %p49, %s50, %s51
      %p55 = pneg %p49
      %p56 = scmp.eq.s32.totalorder %s26, 1
      %p57 = por %p55, %p56
      %p58 = scmp.ne.s32.totalorder %s50, %s53
      %p59 = scmp.eq.s32.totalorder %s26, 0
      %p60 = por %p58, %p59
      %p61 = scmp.ne.s32.totalorder %s50, %s53
      %p62 = scmp.eq.s32.totalorder %s31, 1
      %p63 = por %p61, %p62
      %p64 = scmp.ne.s32.totalorder %s53, %s54
      %p65 = scmp.eq.s32.totalorder %s31, 0
      %p66 = por %p64, %p65
      %p67 = scmp.ne.s32.totalorder %s53, %s54
      %p68 = scmp.eq.s32.totalorder %s32, 1
      %p69 = por %p67, %p68
      %p71 = scmp.ne.s32.totalorder %s54, %s70
      %p72 = scmp.eq.s32.totalorder %s32, 0
      %p73 = por %p71, %p72
      %s75 = sadd.s32 %s74, 1
      %p78 = scmp.eq.s32.totalorder %s26, 1
      %p79 = scmp.ne.s32.totalorder %s74, %s76
      %p80 = scmp.eq.s32.totalorder %s26, 0
      %p81 = por %p79, %p80
      %p82 = scmp.ne.s32.totalorder %s74, %s76
      %p83 = scmp.eq.s32.totalorder %s31, 1
      %p84 = por %p82, %p83
      %p85 = scmp.ne.s32.totalorder %s76, %s77
      %p86 = scmp.eq.s32.totalorder %s31, 0
      %p87 = por %p85, %p86
      %p88 = scmp.ne.s32.totalorder %s76, %s77
      %p89 = scmp.eq.s32.totalorder %s32, 1
      %p90 = por %p88, %p89
      %p92 = scmp.ne.s32.totalorder %s77, %s91
      %p93 = scmp.eq.s32.totalorder %s32, 0
      %p94 = por %p92, %p93
      %s96 = sadd.s32 %s95, 1
      %p99 = scmp.eq.s32.totalorder %s26, 1
      %p100 = scmp.ne.s32.totalorder %s95, %s97
      %p101 = scmp.eq.s32.totalorder %s26, 0
      %p102 = por %p100, %p101
      %p103 = scmp.ne.s32.totalorder %s95, %s97
      %p104 = scmp.eq.s32.totalorder %s31, 1
      %p105 = por %p103, %p104
      %p106 = scmp.ne.s32.totalorder %s97, %s98
      %p107 = scmp.eq.s32.totalorder %s31, 0
      %p108 = por %p106, %p107
      %p109 = scmp.ne.s32.totalorder %s97, %s98
      %p110 = scmp.eq.s32.totalorder %s32, 1
      %p111 = por %p109, %p110
      %p113 = scmp.ne.s32.totalorder %s98, %s112
      %p114 = scmp.eq.s32.totalorder %s32, 0
      %p115 = por %p113, %p114
      %s117 = sadd.s32 %s116, 1
      %p120 = scmp.eq.s32.totalorder %s26, 1
      %p121 = scmp.ne.s32.totalorder %s116, %s118
      %p122 = scmp.eq.s32.totalorder %s26, 0
      %p123 = por %p121, %p122
      %p124 = scmp.ne.s32.totalorder %s116, %s118
      %p125 = scmp.eq.s32.totalorder %s31, 1
      %p126 = por %p124, %p125
      %p127 = scmp.ne.s32.totalorder %s118, %s119
      %p128 = scmp.eq.s32.totalorder %s31, 0
      %p129 = por %p127, %p128
      %p130 = scmp.ne.s32.totalorder %s118, %s119
      %p131 = scmp.eq.s32.totalorder %s32, 1
      %p132 = por %p130, %p131
      %p134 = scmp.ne.s32.totalorder %s119, %s133
      %p135 = scmp.eq.s32.totalorder %s32, 0
      %p136 = por %p134, %p135
      %s138 = sadd.s32 %s137, 1
      %p141 = scmp.eq.s32.totalorder %s26, 1
      %p142 = scmp.ne.s32.totalorder %s137, %s139
      %p143 = scmp.eq.s32.totalorder %s26, 0
      %p144 = por %p142, %p143
      %p145 = scmp.ne.s32.totalorder %s137, %s139
      %p146 = scmp.eq.s32.totalorder %s31, 1
      %p147 = por %p145, %p146
      %p148 = scmp.ne.s32.totalorder %s139, %s140
      %p149 = scmp.eq.s32.totalorder %s31, 0
      %p150 = por %p148, %p149
      %p151 = scmp.ne.s32.totalorder %s139, %s140
      %p152 = scmp.eq.s32.totalorder %s32, 1
      %p153 = por %p151, %p152
      %p155 = scmp.ne.s32.totalorder %s140, %s154
      %p156 = scmp.eq.s32.totalorder %s32, 0
      %p157 = por %p155, %p156
      %s159 = sadd.s32 %s158, 1
      %p162 = scmp.eq.s32.totalorder %s26, 1
      %p163 = scmp.ne.s32.totalorder %s158, %s160
      %p164 = scmp.eq.s32.totalorder %s26, 0
      %p165 = por %p163, %p164
      %p166 = scmp.ne.s32.totalorder %s158, %s160
      %p167 = scmp.eq.s32.totalorder %s31, 1
      %p168 = por %p166, %p167
      %p169 = scmp.ne.s32.totalorder %s160, %s161
      %p170 = scmp.eq.s32.totalorder %s31, 0
      %p171 = por %p169, %p170
      %p172 = scmp.ne.s32.totalorder %s160, %s161
      %p173 = scmp.eq.s32.totalorder %s32, 1
      %p174 = por %p172, %p173
      %p176 = scmp.ne.s32.totalorder %s161, %s175
      %p177 = scmp.eq.s32.totalorder %s32, 0
      %p178 = por %p176, %p177
      %s180 = sadd.s32 %s179, 1
      %p183 = scmp.eq.s32.totalorder %s26, 1
      %p184 = scmp.ne.s32.totalorder %s179, %s181
      %p185 = scmp.eq.s32.totalorder %s26, 0
      %p186 = por %p184, %p185
      %p187 = scmp.ne.s32.totalorder %s179, %s181
      %p188 = scmp.eq.s32.totalorder %s31, 1
      %p189 = por %p187, %p188
      %p190 = scmp.ne.s32.totalorder %s181, %s182
      %p191 = scmp.eq.s32.totalorder %s31, 0
      %p192 = por %p190, %p191
      %p193 = scmp.ne.s32.totalorder %s181, %s182
      %p194 = scmp.eq.s32.totalorder %s32, 1
      %p195 = por %p193, %p194
      %p197 = scmp.ne.s32.totalorder %s182, %s196
      %p198 = scmp.eq.s32.totalorder %s32, 0
      %p199 = por %p197, %p198
      %s201 = sadd.s32 %s200, 1
      %p204 = scmp.eq.s32.totalorder %s26, 1
      %p205 = scmp.ne.s32.totalorder %s200, %s202
      %p206 = scmp.eq.s32.totalorder %s26, 0
      %p207 = por %p205, %p206
      %p208 = scmp.ne.s32.totalorder %s200, %s202
      %p209 = scmp.eq.s32.totalorder %s31, 1
      %p210 = por %p208, %p209
      %p211 = scmp.ne.s32.totalorder %s202, %s203
      %p212 = scmp.eq.s32.totalorder %s31, 0
      %p213 = por %p211, %p212
      %p214 = scmp.ne.s32.totalorder %s202, %s203
      %p215 = scmp.eq.s32.totalorder %s32, 1
      %p216 = por %p214, %p215
      %p218 = scmp.ne.s32.totalorder %s203, %s217
      %p219 = scmp.eq.s32.totalorder %s32, 0
      %p220 = por %p218, %p219
      %s222 = sadd.s32 %s221, 1
      %p225 = scmp.eq.s32.totalorder %s26, 1
      %p226 = scmp.ne.s32.totalorder %s221, %s223
      %p227 = scmp.eq.s32.totalorder %s26, 0
      %p228 = por %p226, %p227
      %p229 = scmp.ne.s32.totalorder %s221, %s223
      %p230 = scmp.eq.s32.totalorder %s31, 1
      %p231 = por %p229, %p230
      %p232 = scmp.ne.s32.totalorder %s223, %s224
      %p233 = scmp.eq.s32.totalorder %s31, 0
      %p234 = por %p232, %p233
      %p235 = scmp.ne.s32.totalorder %s223, %s224
      %p236 = scmp.eq.s32.totalorder %s32, 1
      %p237 = por %p235, %p236
      %p239 = scmp.ne.s32.totalorder %s224, %s238
      %p240 = scmp.eq.s32.totalorder %s32, 0
      %p241 = por %p239, %p240
      %s242 = ssub.s32 %s33, %s45
      %s243 = ssub.s32 %s34, %s41
      %s244 = sor.u32 %s242, %s243
      %p245 = scmp.eq.s32.totalorder %s244, 0
      %s247 = sadd.s32 %s246, 1
      %s248 = scalar_select %p245, %s246, %s247
      %p251 = pneg %p245
      %p252 = scmp.eq.s32.totalorder %s26, 1
      %p253 = por %p251, %p252
      %p254 = scmp.ne.s32.totalorder %s246, %s249
      %p255 = scmp.eq.s32.totalorder %s26, 0
      %p256 = por %p254, %p255
      %p257 = scmp.ne.s32.totalorder %s246, %s249
      %p258 = scmp.eq.s32.totalorder %s31, 1
      %p259 = por %p257, %p258
      %p260 = scmp.ne.s32.totalorder %s249, %s250
      %p261 = scmp.eq.s32.totalorder %s31, 0
      %p262 = por %p260, %p261
      %p263 = scmp.ne.s32.totalorder %s249, %s250
      %p264 = scmp.eq.s32.totalorder %s32, 1
      %p265 = por %p263, %p264
      %p267 = scmp.ne.s32.totalorder %s250, %s266
      %p268 = scmp.eq.s32.totalorder %s32, 0
      %p269 = por %p267, %p268
      %s270 = ssub.s32 %s33, %s45
      %s271 = ssub.s32 %s34, %s41
      %s272 = sor.u32 %s270, %s271
      %p273 = scmp.eq.s32.totalorder %s272, 0
      %s275 = sadd.s32 %s274, 1
      %s276 = scalar_select %p273, %s274, %s275
      %p279 = pneg %p273
      %p280 = scmp.eq.s32.totalorder %s26, 1
      %p281 = por %p279, %p280
      %p282 = scmp.ne.s32.totalorder %s274, %s277
      %p283 = scmp.eq.s32.totalorder %s26, 0
      %p284 = por %p282, %p283
      %p285 = scmp.ne.s32.totalorder %s274, %s277
      %p286 = scmp.eq.s32.totalorder %s31, 1
      %p287 = por %p285, %p286
      %p288 = scmp.ne.s32.totalorder %s277, %s278
      %p289 = scmp.eq.s32.totalorder %s31, 0
      %p290 = por %p288, %p289
      %p291 = scmp.ne.s32.totalorder %s277, %s278
      %p292 = scmp.eq.s32.totalorder %s32, 1
      %p293 = por %p291, %p292
      %p295 = scmp.ne.s32.totalorder %s278, %s294
      %p296 = scmp.eq.s32.totalorder %s32, 0
      %p297 = por %p295, %p296
      %s298 = ssub.s32 %s33, %s45
      %s299 = ssub.s32 %s34, %s41
      %s300 = sor.u32 %s298, %s299
      %p301 = scmp.eq.s32.totalorder %s300, 0
      %s303 = sadd.s32 %s302, 1
      %s304 = scalar_select %p301, %s302, %s303
      %p307 = pneg %p301
      %p308 = scmp.eq.s32.totalorder %s26, 1
      %p309 = por %p307, %p308
      %p310 = scmp.ne.s32.totalorder %s302, %s305
      %p311 = scmp.eq.s32.totalorder %s26, 0
      %p312 = por %p310, %p311
      %p313 = scmp.ne.s32.totalorder %s302, %s305
      %p314 = scmp.eq.s32.totalorder %s31, 1
      %p315 = por %p313, %p314
      %p316 = scmp.ne.s32.totalorder %s305, %s306
      %p317 = scmp.eq.s32.totalorder %s31, 0
      %p318 = por %p316, %p317
      %p319 = scmp.ne.s32.totalorder %s305, %s306
      %p320 = scmp.eq.s32.totalorder %s32, 1
      %p321 = por %p319, %p320
      %p323 = scmp.ne.s32.totalorder %s306, %s322
      %p324 = scmp.eq.s32.totalorder %s32, 0
      %p325 = por %p323, %p324
      %p326 = scmp.le.s32.totalorder 1, %s26
      %p327 = scmp.lt.s32.totalorder %s26, 3
      %p328 = pnand %p326, %p327
      %p329 = pneg %p328
      // Predicated region
      $region9: #{tpu_custom_call.1} parent=5 // pred_check
        _
      $region10: #{tpu_custom_call.1} parent=5 // pred_check_branch
        %331 = sbr.rel (%p328) target = $region12
      $region11: #{tpu_custom_call.1} parent=5 // pred_region
        %s332 = ssub.s32 %s26, 1
        // Predicated region
        $region13: #{tpu_custom_call.1} parent=11 // pred_check
          %p333 = pneg %p87
        $region14: #{tpu_custom_call.1} parent=11 // pred_check_branch
          %335 = sbr.rel (%p333) target = $region16
        $region15: #{tpu_custom_call.1} parent=11 // pred_region
          _
        $region16: #{tpu_custom_call.1} parent=11 // pred_fallthru
          _
        // Predicated region
        $region17: #{tpu_custom_call.1} parent=11 // pred_check
          %p336 = pneg %p108
        $region18: #{tpu_custom_call.1} parent=11 // pred_check_branch
          %338 = sbr.rel (%p336) target = $region20
        $region19: #{tpu_custom_call.1} parent=11 // pred_region
          _
        $region20: #{tpu_custom_call.1} parent=11 // pred_fallthru
          _
        // Predicated region
        $region21: #{tpu_custom_call.1} parent=11 // pred_check
          %p339 = pneg %p129
        $region22: #{tpu_custom_call.1} parent=11 // pred_check_branch
          %341 = sbr.rel (%p339) target = $region24
        $region23: #{tpu_custom_call.1} parent=11 // pred_region
          _
        $region24: #{tpu_custom_call.1} parent=11 // pred_fallthru
          _
        // Predicated region
        $region25: #{tpu_custom_call.1} parent=11 // pred_check
          %p342 = pneg %p150
        $region26: #{tpu_custom_call.1} parent=11 // pred_check_branch
          %344 = sbr.rel (%p342) target = $region28
        $region27: #{tpu_custom_call.1} parent=11 // pred_region
          _
        $region28: #{tpu_custom_call.1} parent=11 // pred_fallthru
          _
        // Predicated region
        $region29: #{tpu_custom_call.1} parent=11 // pred_check
          %p345 = pneg %p171
        $region30: #{tpu_custom_call.1} parent=11 // pred_check_branch
          %347 = sbr.rel (%p345) target = $region32
        $region31: #{tpu_custom_call.1} parent=11 // pred_region
          %s349 = ssub.s32 256, 256
          %350 = vsyncadd [#allocation3], %s349
          %s351 = sshll.u32 [#allocation2], 4
          %s352 = int_to_ptr.vmem [resolvable:$true] %s351
          %357 = dma.hbm_to_vmem [thread:$0]  %s5, 256, %s352, [#allocation3], 64, 64, 4
        $region32: #{tpu_custom_call.1} parent=11 // pred_fallthru
          _
        // Predicated region
        $region33: #{tpu_custom_call.1} parent=11 // pred_check
          %p358 = pneg %p192
        $region34: #{tpu_custom_call.1} parent=11 // pred_check_branch
          %360 = sbr.rel (%p358) target = $region36
        $region35: #{tpu_custom_call.1} parent=11 // pred_region
          _
        $region36: #{tpu_custom_call.1} parent=11 // pred_fallthru
          _
        // Predicated region
        $region37: #{tpu_custom_call.1} parent=11 // pred_check
          %p361 = pneg %p213
        $region38: #{tpu_custom_call.1} parent=11 // pred_check_branch
          %363 = sbr.rel (%p361) target = $region40
        $region39: #{tpu_custom_call.1} parent=11 // pred_region
          %s365 = ssub.s32 256, 256
          %366 = vsyncadd [#allocation6], %s365
          %s367 = sshll.u32 [#allocation5], 4
          %s368 = int_to_ptr.vmem [resolvable:$true] %s367
          %373 = dma.hbm_to_vmem [thread:$0]  %s7, 256, %s368, [#allocation6], 64, 64, 4
        $region40: #{tpu_custom_call.1} parent=11 // pred_fallthru
          _
        // Predicated region
        $region41: #{tpu_custom_call.1} parent=11 // pred_check
          %p374 = pneg %p234
        $region42: #{tpu_custom_call.1} parent=11 // pred_check_branch
          %376 = sbr.rel (%p374) target = $region44
        $region43: #{tpu_custom_call.1} parent=11 // pred_region
          _
        $region44: #{tpu_custom_call.1} parent=11 // pred_fallthru
          _
      $region12: #{tpu_custom_call.1} parent=5 // pred_fallthru
        _
      %p377 = scmp.lt.s32.totalorder %s26, 2
      // Predicated region
      $region45: #{tpu_custom_call.1} parent=5 // pred_check
        %p378 = pneg %p377
      $region46: #{tpu_custom_call.1} parent=5 // pred_check_branch
        %380 = sbr.rel (%p378) target = $region48
      $region47: #{tpu_custom_call.1} parent=5 // pred_region
        // Predicated region
        $region49: #{tpu_custom_call.1} parent=47 // pred_check
          %p381 = pneg %p60
        $region50: #{tpu_custom_call.1} parent=47 // pred_check_branch
          %383 = sbr.rel (%p381) target = $region52
        $region51: #{tpu_custom_call.1} parent=47 // pred_region
          %p384 = scmp.lt.s32.totalorder %s33, 1
          %s385 = scalar_select %p384, %s33, 1
          %p386 = scmp.lt.s32.totalorder %s34, 0
          %s387 = scalar_select %p386, %s34, 0
          %s388 = sadd.s32 %s387, %s385
          %s389 = smul.addr %s388, 8
          %s390 = scalar_lea.vmem %s0, %s389
        $region52: #{tpu_custom_call.1} parent=47 // pred_fallthru
          _
      $region48: #{tpu_custom_call.1} parent=5 // pred_fallthru
        _
      %p391 = scmp.le.s32.totalorder 1, %s26
      %p392 = scmp.lt.s32.totalorder %s26, 3
      %p393 = pnand %p391, %p392
      %p394 = pneg %p393
      // Predicated region
      $region53: #{tpu_custom_call.1} parent=5 // pred_check
        _
      $region54: #{tpu_custom_call.1} parent=5 // pred_check_branch
        %396 = sbr.rel (%p393) target = $region56
      $region55: #{tpu_custom_call.1} parent=5 // pred_region
        %s397 = ssub.s32 %s26, 1
        // Predicated region
        $region57: #{tpu_custom_call.1} parent=55 // pred_check
          %p398 = pneg %p171
        $region58: #{tpu_custom_call.1} parent=55 // pred_check_branch
          %400 = sbr.rel (%p398) target = $region60
        $region59: #{tpu_custom_call.1} parent=55 // pred_region
          %401 = dma.done [#allocation3], 256
        $region60: #{tpu_custom_call.1} parent=55 // pred_fallthru
          _
        // Predicated region
        $region61: #{tpu_custom_call.1} parent=55 // pred_check
          %p402 = pneg %p213
        $region62: #{tpu_custom_call.1} parent=55 // pred_check_branch
          %404 = sbr.rel (%p402) target = $region64
        $region63: #{tpu_custom_call.1} parent=55 // pred_region
          %405 = dma.done [#allocation6], 256
        $region64: #{tpu_custom_call.1} parent=55 // pred_fallthru
          _
        %p406 = scmp.lt.s32.totalorder %s35, 1
        %s407 = scalar_select %p406, %s35, 1
        %p408 = scmp.lt.s32.totalorder %s36, 0
        %s409 = scalar_select %p408, %s36, 0
        %s410 = sadd.s32 %s409, %s407
        %s411 = smul.addr %s410, 8
        %s412 = scalar_lea.vmem %s0, %s411
        %p413 = pneg %p66
        %p414 = pneg %p63
        %p415 = pneg %p87
        %p416 = pneg %p84
        %p417 = pneg %p108
        %p418 = pneg %p105
        %p419 = pneg %p129
        %p420 = pneg %p126
        %p421 = pneg %p150
        %p422 = pneg %p147
        %p423 = pneg %p171
        %p424 = pneg %p168
        %p425 = pneg %p192
        %p426 = pneg %p189
        %p427 = pneg %p213
        %p428 = pneg %p210
        %p429 = pneg %p234
        %p430 = pneg %p231
        %p431 = pneg %p262
        %p432 = pneg %p259
        %s433 = sand.u32 %s249, 1
        %s434 = scalar_lea.sflag [#allocation4], %s433
        %s435 = sand.u32 %s249, 1
        %s436 = smul.addr %s435, 16
        %s437 = scalar_lea.vmem [#allocation7], %s436
        %p438 = pneg %p290
        %p439 = pneg %p287
        %s440 = sand.u32 %s31, 1
        %s441 = scalar_lea.sflag [#allocation9], %s440
        %s442 = sand.u32 %s277, 1
        %s443 = smul.addr %s442, 16
        %s444 = scalar_lea.vmem [#allocation8], %s443
        %p445 = pneg %p318
        %p446 = pneg %p315
        %s447 = sand.u32 %s31, 1
        %s448 = scalar_lea.sflag [#allocation9], %s447
        %s449 = sand.u32 %s305, 1
        %s450 = smul.addr %s449, 16
        %s451 = scalar_lea.vmem [#allocation10], %s450
        %p452 = scmp.lt.s32.totalorder %s35, 1
        %s453 = scalar_select %p452, %s35, 1
        %p454 = scmp.lt.s32.totalorder %s36, 0
        %s455 = scalar_select %p454, %s36, 0
        %s456 = sadd.s32 %s455, %s453
        %s457 = smul.addr %s456, 8
        %s458 = scalar_lea.vmem %s0, %s457
        %v460 = vld [vmem:[%s458] sm:$0xff]
        %vm461 = vcmask 261120
        %v462 = vsel %vm461, %v460, 0.0
        %463 = vadd.xlane.f32.xlu0 %v462
        %v464 = vpop.xlane.xlu0 %463
        %v465 = vrcp.pop 32.0
        %v466 = vmul.f32 %v464, %v465
        %v467 = vsub.f32 %v460, %v466
        %v468 = vmul.f32 %v467, %v467
        %v469 = vsel %vm461, %v468, 0.0
        %470 = vadd.xlane.f32.xlu0 %v469
        %v471 = vpop.xlane.xlu0 %470
        %v472 = vmul.f32 %v471, %v465
        %v473 = vadd.f32 %v472, 1e-05
        %v474 = vrsqrt.pop %v473
        %v475 = vmul.f32 %v467, %v474
        %v476 = vld [vmem:[%s1] sm:$0x1]
        %v478 = vlaneseq
        %v479 = vshrl.u32 %v478, 7
        %v480 = vsub.s32 0, %v479
        %v481 = vrot.slane %v476, %v480
        %v483 = vmul.f32 %v475, %v481
        %v484 = vld [vmem:[%s2] sm:$0x1]
        %v486 = vlaneseq
        %v487 = vshrl.u32 %v486, 7
        %v488 = vsub.s32 0, %v487
        %v489 = vrot.slane %v484, %v488
        %v491 = vadd.f32 %v483, %v489
        %v492 = vmax.f32 %v491, 0.0
        %v493 = vpack.c.bf16 %v492, %v492
        %v494 = vld [vmem:[%s3] sm:$0xf]
        %v495 = vld [vmem:[%s3 + $0x4] sm:$0xf]
        %v496 = vld [vmem:[%s3 + $0x8] sm:$0xf]
        %v497 = vld [vmem:[%s3 + $0xc] sm:$0xf]
        %v498 = vld [vmem:[%s4] sm:$0x1]
        %v500 = vlaneseq
        %v501 = vshrl.u32 %v500, 7
        %v502 = vsub.s32 0, %v501
        %v503 = vrot.slane %v498, %v502
        %v509 = vunpack.c.l.b16 %v494
        %v510 = vunpack.c.l.b16 %v495
        %v511 = vunpack.c.l.b16 %v496
        %v512 = vunpack.c.l.b16 %v497
        %v513 = vpack.c.b16 %v510, %v509
        %v514 = vpack.c.b16 %v512, %v511
        %v518 = vsel %vm461, %v493, 0
        %520 = vmatprep.subr.bf16.mxu0 0
        %521 = vmatpush1.bf16.msra.mxu0 0
        %522 = vmatprep.subr.bf16.mxu0 0
        %523 = vmatpush1.bf16.msra.mxu0 0
        %524 = vmatprep.subr.bf16.mxu0 0
        %525 = vmatpush1.bf16.msra.mxu0 0
        %526 = vmatprep.subr.bf16.mxu0 0
        %527 = vmatpush1.bf16.msra.mxu0 0
        %528 = vmatprep.subr.bf16.mxu0 0
        %529 = vmatpush1.bf16.msra.mxu0 0
        %530 = vmatprep.subr.bf16.mxu0 0
        %531 = vmatpush1.bf16.msra.mxu0 0
        %532 = vmatprep.subr.bf16.mxu0 0
        %533 = vmatpush1.bf16.msra.mxu0 %v514
        %534 = vmatprep.subr.bf16.mxu0 0
        %535 = vmatpush1.bf16.msra.mxu0 %v513
        %536 = vmatprep.subr.bf16.mxu0 0
        %537 = vmatpush2.bf16.msra.mxu0 0
        %538 = vmatprep.subr.bf16.mxu0 0
        %539 = vmatpush2.bf16.msra.mxu0 0
        %540 = vmatprep.subr.bf16.mxu0 0
        %541 = vmatpush2.bf16.msra.mxu0 0
        %542 = vmatprep.subr.bf16.mxu0 0
        %543 = vmatpush2.bf16.msra.mxu0 0
        %544 = vmatprep.subr.bf16.mxu0 0
        %545 = vmatpush2.bf16.msra.mxu0 0
        %546 = vmatprep.subr.bf16.mxu0 0
        %547 = vmatpush2.bf16.msra.mxu0 0
        %548 = vmatprep.subr.bf16.mxu0 0
        %549 = vmatpush2.bf16.msra.mxu0 0
        %550 = vmatprep.subr.bf16.mxu0 0
        %551 = vmatpush2.bf16.msra.mxu0 0
        %552 = vmatprep.mubr.bf16.mxu0 0
        %553 = vmatmul.mubr.bf16.gmra.mxu0 %v518
        %v554 = vpop.f32.mrf.mxu0
        %v555 = vadd.f32 %v503, %v554
        %v556 = vpop.f32.mrf.mxu0
        %v557 = vpop.f32.mrf.mxu0
        %v558 = vpop.f32.mrf.mxu0
        %559 = vdwg.mxu0
        %v560 = vld [vmem:[#allocation2] sm:$0xf]
        %v561 = vld [vmem:[#allocation2 + $0x4] sm:$0xf]
        %v562 = vld [vmem:[#allocation2 + $0x8] sm:$0xf]
        %v563 = vld [vmem:[#allocation2 + $0xc] sm:$0xf]
        %v564 = vld [vmem:[%s6] sm:$0xff]
        %v565 = vld [vmem:[%s6 + $0x8] sm:$0xff]
        %v566 = vld [vmem:[%s6 + $0x10] sm:$0xff]
        %v567 = vld [vmem:[%s6 + $0x18] sm:$0xff]
        %569 = vset.pattern.permute.xlu0 0
        %570 = vperm.xlu0 %569, %v564
        %v571 = vpop.permute.xlu0 %570
        %574 = vset.pattern.permute.xlu0 0
        %575 = vperm.xlu0 %574, %v565
        %v576 = vpop.permute.xlu0 %575
        %579 = vset.pattern.permute.xlu0 0
        %580 = vperm.xlu0 %579, %v566
        %v581 = vpop.permute.xlu0 %580
        %584 = vset.pattern.permute.xlu0 0
        %585 = vperm.xlu0 %584, %v567
        %v586 = vpop.permute.xlu0 %585
        %v592 = vunpack.c.l.b16 %v560
        %v593 = vunpack.c.l.b16 %v561
        %v594 = vunpack.c.l.b16 %v562
        %v595 = vunpack.c.l.b16 %v563
        %v596 = vpack.c.b16 %v593, %v592
        %v597 = vpack.c.b16 %v595, %v594
        %v599 = vsel %vm461, %v596, 0
        %v602 = vsel %vm461, %v597, 0
        %604 = vmatprep.subr.bf16.mxu0 0
        %605 = vmatpush1.bf16.xpose.msra.mxu0 0
        %606 = vmatprep.subr.bf16.mxu0 0
        %607 = vmatpush1.bf16.xpose.msra.mxu0 0
        %608 = vmatprep.subr.bf16.mxu0 0
        %609 = vmatpush1.bf16.xpose.msra.mxu0 0
        %610 = vmatprep.subr.bf16.mxu0 0
        %611 = vmatpush1.bf16.xpose.msra.mxu0 0
        %612 = vmatprep.subr.bf16.mxu0 0
        %613 = vmatpush1.bf16.xpose.msra.mxu0 0
        %614 = vmatprep.subr.bf16.mxu0 0
        %615 = vmatpush1.bf16.xpose.msra.mxu0 0
        %616 = vmatprep.subr.bf16.mxu0 0
        %617 = vmatpush1.bf16.xpose.msra.mxu0 0
        %618 = vmatprep.subr.bf16.mxu0 0
        %619 = vmatpush1.bf16.xpose.msra.mxu0 %v518
        %620 = vmatprep.subr.bf16.mxu0 0
        %621 = vmatpush2.bf16.xpose.msra.mxu0 0
        %622 = vmatprep.subr.bf16.mxu0 0
        %623 = vmatpush2.bf16.xpose.msra.mxu0 0
        %624 = vmatprep.subr.bf16.mxu0 0
        %625 = vmatpush2.bf16.xpose.msra.mxu0 0
        %626 = vmatprep.subr.bf16.mxu0 0
        %627 = vmatpush2.bf16.xpose.msra.mxu0 0
        %628 = vmatprep.subr.bf16.mxu0 0
        %629 = vmatpush2.bf16.xpose.msra.mxu0 0
        %630 = vmatprep.subr.bf16.mxu0 0
        %631 = vmatpush2.bf16.xpose.msra.mxu0 0
        %632 = vmatprep.subr.bf16.mxu0 0
        %633 = vmatpush2.bf16.xpose.msra.mxu0 0
        %634 = vmatprep.subr.bf16.mxu0 0
        %635 = vmatpush2.bf16.xpose.msra.mxu0 0
        %636 = vmatprep.mubr.bf16.mxu0 0
        %637 = vmatmul.mubr.bf16.gmra.mxu0 %v599
        %v638 = vpop.f32.mrf.mxu0
        %v639 = vadd.f32 %v571, %v638
        %v640 = vpop.f32.mrf.mxu0
        %v641 = vpop.f32.mrf.mxu0
        %v642 = vadd.f32 %v576, %v641
        %v643 = vpop.f32.mrf.mxu0
        %644 = vmatprep.mubr.bf16.mxu0 0
        %645 = vmatmul.mubr.bf16.gmra.mxu0 %v602
        %v646 = vpop.f32.mrf.mxu0
        %v647 = vadd.f32 %v581, %v646
        %v648 = vpop.f32.mrf.mxu0
        %v649 = vpop.f32.mrf.mxu0
        %v650 = vadd.f32 %v586, %v649
        %v651 = vpop.f32.mrf.mxu0
        %652 = vdwg.mxu0
        %v653 = vld [vmem:[#allocation5] sm:$0xf]
        %v654 = vld [vmem:[#allocation5 + $0x4] sm:$0xf]
        %v655 = vld [vmem:[#allocation5 + $0x8] sm:$0xf]
        %v656 = vld [vmem:[#allocation5 + $0xc] sm:$0xf]
        %v657 = vld [vmem:[%s8] sm:$0x1]
        %v659 = vlaneseq
        %v660 = vshrl.u32 %v659, 7
        %v661 = vsub.s32 0, %v660
        %v662 = vrot.slane %v657, %v661
        %v668 = vunpack.c.l.b16 %v653
        %v669 = vunpack.c.l.b16 %v654
        %v670 = vunpack.c.l.b16 %v655
        %v671 = vunpack.c.l.b16 %v656
        %v672 = vpack.c.b16 %v669, %v668
        %v673 = vpack.c.b16 %v671, %v670
        %676 = vmatprep.subr.bf16.mxu0 0
        %677 = vmatpush1.bf16.msra.mxu0 0
        %678 = vmatprep.subr.bf16.mxu0 0
        %679 = vmatpush1.bf16.msra.mxu0 0
        %680 = vmatprep.subr.bf16.mxu0 0
        %681 = vmatpush1.bf16.msra.mxu0 0
        %682 = vmatprep.subr.bf16.mxu0 0
        %683 = vmatpush1.bf16.msra.mxu0 0
        %684 = vmatprep.subr.bf16.mxu0 0
        %685 = vmatpush1.bf16.msra.mxu0 0
        %686 = vmatprep.subr.bf16.mxu0 0
        %687 = vmatpush1.bf16.msra.mxu0 0
        %688 = vmatprep.subr.bf16.mxu0 0
        %689 = vmatpush1.bf16.msra.mxu0 %v673
        %690 = vmatprep.subr.bf16.mxu0 0
        %691 = vmatpush1.bf16.msra.mxu0 %v672
        %692 = vmatprep.subr.bf16.mxu0 0
        %693 = vmatpush2.bf16.msra.mxu0 0
        %694 = vmatprep.subr.bf16.mxu0 0
        %695 = vmatpush2.bf16.msra.mxu0 0
        %696 = vmatprep.subr.bf16.mxu0 0
        %697 = vmatpush2.bf16.msra.mxu0 0
        %698 = vmatprep.subr.bf16.mxu0 0
        %699 = vmatpush2.bf16.msra.mxu0 0
        %700 = vmatprep.subr.bf16.mxu0 0
        %701 = vmatpush2.bf16.msra.mxu0 0
        %702 = vmatprep.subr.bf16.mxu0 0
        %703 = vmatpush2.bf16.msra.mxu0 0
        %704 = vmatprep.subr.bf16.mxu0 0
        %705 = vmatpush2.bf16.msra.mxu0 0
        %706 = vmatprep.subr.bf16.mxu0 0
        %707 = vmatpush2.bf16.msra.mxu0 0
        %708 = vmatprep.mubr.bf16.mxu0 0
        %709 = vmatmul.mubr.bf16.gmra.mxu0 %v518
        %v710 = vpop.f32.mrf.mxu0
        %v711 = vadd.f32 %v662, %v710
        %v712 = vpop.f32.mrf.mxu0
        %v713 = vpop.f32.mrf.mxu0
        %v714 = vpop.f32.mrf.mxu0
        %715 = vdwg.mxu0
        %v716 = vpack.c.bf16 %v555, %v555
        %vm717 = vcmask 60416
        %718 = vst.msk [vmem:[%s437] sm:$0xf] %vm717, %v716
        %v719 = vpack.c.bf16 %v639, %v639
        %720 = vst.msk [vmem:[%s444] sm:$0xf] %vm717, %v719
        %v721 = vpack.c.bf16 %v711, %v711
        %722 = vst.msk [vmem:[%s451] sm:$0xf] %vm717, %v721
        %v724 = vunpack.c.l.b16 %v716
        %v725 = vpack.c.b16 %v724, %v724
        %726 = vrot.lane.b32.xlu0 %v725, 120
        %v727 = vpop.permute.xlu0 %726
        %s729 = scalar_lea.vmem %s437, 4 [#allocation7]
        %730 = vst.msk [vmem:[%s729] sm:$0xf] %vm717, %v727
        %v731 = vpack.c.bf16 %v642, %v642
        %s732 = scalar_lea.vmem %s444, 4 [#allocation8]
        %733 = vst.msk [vmem:[%s732] sm:$0xf] %vm717, %v731
        %v735 = vunpack.c.l.b16 %v721
        %v736 = vpack.c.b16 %v735, %v735
        %737 = vrot.lane.b32.xlu0 %v736, 120
        %v738 = vpop.permute.xlu0 %737
        %s740 = scalar_lea.vmem %s451, 4 [#allocation10]
        %741 = vst.msk [vmem:[%s740] sm:$0xf] %vm717, %v738
        %742 = vrot.lane.b32.xlu0 %v725, 112
        %v743 = vpop.permute.xlu0 %742
        %s745 = scalar_lea.vmem %s437, 8 [#allocation7]
        %746 = vst.msk [vmem:[%s745] sm:$0xf] %vm717, %v743
        %v747 = vpack.c.bf16 %v647, %v647
        %s748 = scalar_lea.vmem %s444, 8 [#allocation8]
        %749 = vst.msk [vmem:[%s748] sm:$0xf] %vm717, %v747
        %750 = vrot.lane.b32.xlu0 %v736, 112
        %v751 = vpop.permute.xlu0 %750
        %s753 = scalar_lea.vmem %s451, 8 [#allocation10]
        %754 = vst.msk [vmem:[%s753] sm:$0xf] %vm717, %v751
        %755 = vrot.lane.b32.xlu0 %v725, 104
        %v756 = vpop.permute.xlu0 %755
        %s758 = scalar_lea.vmem %s437, 12 [#allocation7]
        %759 = vst.msk [vmem:[%s758] sm:$0xf] %vm717, %v756
        %v760 = vpack.c.bf16 %v650, %v650
        %s761 = scalar_lea.vmem %s444, 12 [#allocation8]
        %762 = vst.msk [vmem:[%s761] sm:$0xf] %vm717, %v760
        %763 = vrot.lane.b32.xlu0 %v736, 104
        %v764 = vpop.permute.xlu0 %763
        %s766 = scalar_lea.vmem %s451, 12 [#allocation10]
        %767 = vst.msk [vmem:[%s766] sm:$0xf] %vm717, %v764
        %s768 = sand.u32 %s249, 1
        %s769 = scalar_lea.sflag [#allocation4], %s768
        %s770 = sand.u32 %s249, 1
        %s771 = smul.addr %s770, 16
        %s772 = scalar_lea.vmem [#allocation7], %s771
        %s773 = sand.u32 %s31, 1
        %s774 = scalar_lea.sflag [#allocation9], %s773
        %s775 = sand.u32 %s277, 1
        %s776 = smul.addr %s775, 16
        %s777 = scalar_lea.vmem [#allocation8], %s776
        %s778 = sand.u32 %s31, 1
        %s779 = scalar_lea.sflag [#allocation9], %s778
        %s780 = sand.u32 %s305, 1
        %s781 = smul.addr %s780, 16
        %s782 = scalar_lea.vmem [#allocation10], %s781
        // Predicated region
        $region65: #{tpu_custom_call.1} parent=55 // pred_check
          %p783 = pneg %p259
        $region66: #{tpu_custom_call.1} parent=55 // pred_check_branch
          %785 = sbr.rel (%p783) target = $region68
        $region67: #{tpu_custom_call.1} parent=55 // pred_region
          %s787 = ssub.s32 256, 256
          %788 = vsyncadd %s769, %s787
          %s789 = smul.addr %s35, 4
          %s790 = sadd.s32 %s36, %s789
          %s791 = smul.addr %s790, 64
          %s792 = scalar_lea.hbm %s9, %s791
          %s793 = sshll.u32 %s772, 4
          %s794 = int_to_ptr.vmem [resolvable:$true] %s793
          %799 = dma.vmem_to_hbm [thread:$0]  %s794, 256, %s792, %s769, 64, 64, 4
        $region68: #{tpu_custom_call.1} parent=55 // pred_fallthru
          _
        // Predicated region
        $region69: #{tpu_custom_call.1} parent=55 // pred_check
          %p800 = pneg %p287
        $region70: #{tpu_custom_call.1} parent=55 // pred_check_branch
          %802 = sbr.rel (%p800) target = $region72
        $region71: #{tpu_custom_call.1} parent=55 // pred_region
          %s804 = ssub.s32 256, 256
          %805 = vsyncadd %s774, %s804
          %s806 = smul.addr %s35, 4
          %s807 = sadd.s32 %s36, %s806
          %s808 = smul.addr %s807, 64
          %s809 = scalar_lea.hbm %s10, %s808
          %s810 = sshll.u32 %s777, 4
          %s811 = int_to_ptr.vmem [resolvable:$true] %s810
          %816 = dma.vmem_to_hbm [thread:$0]  %s811, 256, %s809, %s774, 64, 64, 4
        $region72: #{tpu_custom_call.1} parent=55 // pred_fallthru
          _
        // Predicated region
        $region73: #{tpu_custom_call.1} parent=55 // pred_check
          %p817 = pneg %p315
        $region74: #{tpu_custom_call.1} parent=55 // pred_check_branch
          %819 = sbr.rel (%p817) target = $region76
        $region75: #{tpu_custom_call.1} parent=55 // pred_region
          %s821 = ssub.s32 256, 256
          %822 = vsyncadd %s779, %s821
          %s823 = smul.addr %s35, 4
          %s824 = sadd.s32 %s36, %s823
          %s825 = smul.addr %s824, 64
          %s826 = scalar_lea.hbm %s11, %s825
          %s827 = sshll.u32 %s782, 4
          %s828 = int_to_ptr.vmem [resolvable:$true] %s827
          %833 = dma.vmem_to_hbm [thread:$0]  %s828, 256, %s826, %s779, 64, 64, 4
        $region76: #{tpu_custom_call.1} parent=55 // pred_fallthru
          _
      $region56: #{tpu_custom_call.1} parent=5 // pred_fallthru
        _
      %p834 = scmp.le.s32.totalorder 2, %s26
      // Predicated region
      $region77: #{tpu_custom_call.1} parent=5 // pred_check
        %p835 = pneg %p834
      $region78: #{tpu_custom_call.1} parent=5 // pred_check_branch
        %837 = sbr.rel (%p835) target = $region80
      $region79: #{tpu_custom_call.1} parent=5 // pred_region
        %s838 = ssub.s32 %s26, 2
        // Predicated region
        $region81: #{tpu_custom_call.1} parent=79 // pred_check
          %p839 = pneg %p265
        $region82: #{tpu_custom_call.1} parent=79 // pred_check_branch
          %841 = sbr.rel (%p839) target = $region84
        $region83: #{tpu_custom_call.1} parent=79 // pred_region
          %s842 = sand.u32 %s250, 1
          %s843 = scalar_lea.sflag [#allocation4], %s842
          %s844 = sand.u32 %s250, 1
          %s845 = smul.addr %s844, 16
          %s846 = scalar_lea.vmem [#allocation7], %s845
          %847 = dma.done %s843, 256
        $region84: #{tpu_custom_call.1} parent=79 // pred_fallthru
          _
        // Predicated region
        $region85: #{tpu_custom_call.1} parent=79 // pred_check
          %p848 = pneg %p293
        $region86: #{tpu_custom_call.1} parent=79 // pred_check_branch
          %850 = sbr.rel (%p848) target = $region88
        $region87: #{tpu_custom_call.1} parent=79 // pred_region
          %s851 = sand.u32 %s32, 1
          %s852 = scalar_lea.sflag [#allocation9], %s851
          %s853 = sand.u32 %s278, 1
          %s854 = smul.addr %s853, 16
          %s855 = scalar_lea.vmem [#allocation8], %s854
          %856 = dma.done %s852, 256
        $region88: #{tpu_custom_call.1} parent=79 // pred_fallthru
          _
        // Predicated region
        $region89: #{tpu_custom_call.1} parent=79 // pred_check
          %p857 = pneg %p321
        $region90: #{tpu_custom_call.1} parent=79 // pred_check_branch
          %859 = sbr.rel (%p857) target = $region92
        $region91: #{tpu_custom_call.1} parent=79 // pred_region
          %s860 = sand.u32 %s32, 1
          %s861 = scalar_lea.sflag [#allocation9], %s860
          %s862 = sand.u32 %s306, 1
          %s863 = smul.addr %s862, 16
          %s864 = scalar_lea.vmem [#allocation10], %s863
          %865 = dma.done %s861, 256
        $region92: #{tpu_custom_call.1} parent=79 // pred_fallthru
          _
      $region80: #{tpu_custom_call.1} parent=5 // pred_fallthru
        _
    $region6: #{tpu_custom_call.1} parent=1 // loop_footer
      %s30 = sadd.s32 1, %s26
    $region7: #{tpu_custom_call.1} parent=1 // loop_footer_branch
      %25 = sbr.rel target = $region3
    $region8: #{tpu_custom_call.1} parent=1 // loop_exit
      _
    %866 = vsyncpa [#allocation3], 1
    %s867 = scalar_lea.sflag [#allocation3], 1
    %868 = vsyncpa %s867, 1
    %869 = vsyncpa [#allocation6], 1
    %870 = vsyncpa [#allocation4], 1
    %s871 = scalar_lea.sflag [#allocation4], 1
    %872 = vsyncpa %s871, 1
    %873 = vsyncpa [#allocation9], 1
    %s874 = scalar_lea.sflag [#allocation9], 1
    %875 = vsyncpa %s874, 1

// kernel: tpu_custom_call.1
$region0: #{tpu_custom_call.1}
  #allocation0 [shape = 'u32[]', space=smem, size = 0x4, offset = 0x4, fixed_abs, tag = 'smem constant byte address 0x4 - core index']
  #allocation1 [shape = 'u32[144,128]{1,0:T(1,128)}', space=vmem, size = 0x12000, scoped, tag = 'internal scratch']
  %s0 = inlined_call_operand.vmem [shape: f32[2,8,32], index: 0, kind: input, shape index: {}]
  %s1 = inlined_call_operand.vmem [shape: f32[1,32], index: 1, kind: input, shape index: {}]
  %s2 = inlined_call_operand.vmem [shape: f32[1,32], index: 2, kind: input, shape index: {}]
  %s3 = inlined_call_operand.vmem [shape: bf16[32,32], index: 3, kind: input, shape index: {}]
  %s4 = inlined_call_operand.vmem [shape: f32[1,32], index: 4, kind: input, shape index: {}]
  %s5 = inlined_call_operand.hbm [shape: bf16[32,32], index: 5, kind: input, shape index: {}]
  %s6 = inlined_call_operand.vmem [shape: f32[32,1], index: 6, kind: input, shape index: {}]
  %s7 = inlined_call_operand.hbm [shape: bf16[32,32], index: 7, kind: input, shape index: {}]
  %s8 = inlined_call_operand.vmem [shape: f32[1,32], index: 8, kind: input, shape index: {}]
  %s9 = inlined_call_operand.hbm [shape: bf16[2,4,8,8], index: 9, kind: output, shape index: {0}]
  %s10 = inlined_call_operand.hbm [shape: bf16[2,4,8,8], index: 10, kind: output, shape index: {1}]
  %s11 = inlined_call_operand.hbm [shape: bf16[2,4,8,8], index: 11, kind: output, shape index: {2}]
  %12 = xla_tuple %s9, %s10, %s11
  %s13 = sld [smem:[#allocation0]]
  $region93: #{tpu_custom_call.1} parent=0
    _
  %s15 = ssub.s32 1, %s13
  %s16 = scalar_select 0, %s15, %s13
  $region1: #{tpu_custom_call.1} parent=0
    #allocation2 [shape = 'u8[8192]{0}', space=vmem, size = 0x2000, scoped, tag = 'input window, operand 5, single buffered']
    #allocation3 [shape = 's32[2]{0}', space=sflag, size = 0x8, scoped, tag = 'scoped memory for tpu_custom_call.1']
    #allocation4 [shape = 's32[2]{0}', space=sflag, size = 0x8, scoped, tag = 'scoped memory for tpu_custom_call.1']
    #allocation5 [shape = 'u8[8192]{0}', space=vmem, size = 0x2000, scoped, tag = 'input window, operand 7, single buffered']
    #allocation6 [shape = 's32[1]{0}', space=sflag, size = 0x4, scoped, tag = 'scoped memory for tpu_custom_call.1']
    #allocation7 [shape = 'u8[16384]{0}', space=vmem, size = 0x4000, scoped, tag = 'output window, operand 0']
    #allocation8 [shape = 'u8[16384]{0}', space=vmem, size = 0x4000, scoped, tag = 'output window, operand 1']
    #allocation9 [shape = 's32[2]{0}', space=sflag, size = 0x8, scoped, tag = 'scoped memory for tpu_custom_call.1']
    #allocation10 [shape = 'u8[16384]{0}', space=vmem, size = 0x4000, scoped, tag = 'output window, operand 2']
    %17 = vsyncpa [#allocation3], 0
    %18 = vsyncpa [#allocation6], 0
    %19 = vsyncpa [#allocation4], 0
    %s20 = scalar_lea.sflag [#allocation4], 1
    %21 = vsyncpa %s20, 0
    %22 = vsyncpa [#allocation9], 0
    %s23 = scalar_lea.sflag [#allocation9], 1
    %24 = vsyncpa %s23, 0
    loop: start=0, step=1, limit=4
    $region2: #{tpu_custom_call.1} parent=1 // loop_pre_header
      _
    $region3: #{tpu_custom_call.1} parent=1 // loop_header
      %s26 = sphi 0, %s30
      %p27 = scmp.ge.s32.totalorder %s26, 4
      %s33 = sphi 0, %s45
      %s34 = sphi 0, %s41
      %s35 = sphi 0, %s33
      %s36 = sphi 0, %s34
      %s37 = sphi 0, %s35
      %s38 = sphi 0, %s36
      %s50 = sphi 0, %s52
      %s53 = sphi 0, %s50
      %s54 = sphi 0, %s53
      %s70 = sphi 0, %s54
      %s74 = sphi 0, %s74
      %s76 = sphi 0, %s74
      %s77 = sphi 0, %s76
      %s91 = sphi 0, %s77
      %s95 = sphi 0, %s95
      %s97 = sphi 0, %s95
      %s98 = sphi 0, %s97
      %s112 = sphi 0, %s98
      %s116 = sphi 0, %s116
      %s118 = sphi 0, %s116
      %s119 = sphi 0, %s118
      %s133 = sphi 0, %s119
      %s137 = sphi 0, %s137
      %s139 = sphi 0, %s137
      %s140 = sphi 0, %s139
      %s154 = sphi 0, %s140
      %s158 = sphi 0, %s158
      %s160 = sphi 0, %s158
      %s161 = sphi 0, %s160
      %s175 = sphi 0, %s161
      %s179 = sphi 0, %s179
      %s181 = sphi 0, %s179
      %s182 = sphi 0, %s181
      %s196 = sphi 0, %s182
      %s200 = sphi 0, %s200
      %s202 = sphi 0, %s200
      %s203 = sphi 0, %s202
      %s217 = sphi 0, %s203
      %s221 = sphi 0, %s221
      %s223 = sphi 0, %s221
      %s224 = sphi 0, %s223
      %s238 = sphi 0, %s224
      %s246 = sphi 0, %s248
      %s249 = sphi 0, %s246
      %s250 = sphi 0, %s249
      %s266 = sphi 0, %s250
      %s274 = sphi 0, %s276
      %s277 = sphi 0, %s274
      %s278 = sphi 0, %s277
      %s294 = sphi 0, %s278
      %s302 = sphi 0, %s304
      %s305 = sphi 0, %s302
      %s306 = sphi 0, %s305
      %s322 = sphi 0, %s306
    $region4: #{tpu_custom_call.1} parent=1 // loop_header_branch
      %29 = sbr.rel (%p27) target = $region8
    $region5: #{tpu_custom_call.1} parent=1 // loop_body
      %s31 = ssub.s32 %s26, 1
      %s32 = ssub.s32 %s26, 2
      %s39 = sadd.s32 1, %s34
      %p40 = scmp.ge.s32.totalorder %s39, 1
      %s41 = scalar_select %p40, 0, %s39
      %s42 = sadd.s32 1, %s33
      %s43 = scalar_select %p40, %s42, %s33
      %p44 = scmp.ge.s32.totalorder %s43, 2
      %s45 = scalar_select %p44, 0, %s43
      %s46 = ssub.s32 %s33, %s45
      %s47 = ssub.s32 %s34, %s41
      %s48 = sor.u32 %s46, %s47
      %p49 = scmp.eq.s32.totalorder %s48, 0
      %s51 = sadd.s32 %s50, 1
      %s52 = scalar_select %p49, %s50, %s51
      %p55 = pneg %p49
      %p56 = scmp.eq.s32.totalorder %s26, 1
      %p57 = por %p55, %p56
      %p58 = scmp.ne.s32.totalorder %s50, %s53
      %p59 = scmp.eq.s32.totalorder %s26, 0
      %p60 = por %p58, %p59
      %p61 = scmp.ne.s32.totalorder %s50, %s53
      %p62 = scmp.eq.s32.totalorder %s31, 1
      %p63 = por %p61, %p62
      %p64 = scmp.ne.s32.totalorder %s53, %s54
      %p65 = scmp.eq.s32.totalorder %s31, 0
      %p66 = por %p64, %p65
      %p67 = scmp.ne.s32.totalorder %s53, %s54
      %p68 = scmp.eq.s32.totalorder %s32, 1
      %p69 = por %p67, %p68
      %p71 = scmp.ne.s32.totalorder %s54, %s70
      %p72 = scmp.eq.s32.totalorder %s32, 0
      %p73 = por %p71, %p72
      %s75 = sadd.s32 %s74, 1
      %p78 = scmp.eq.s32.totalorder %s26, 1
      %p79 = scmp.ne.s32.totalorder %s74, %s76
      %p80 = scmp.eq.s32.totalorder %s26, 0
      %p81 = por %p79, %p80
      %p82 = scmp.ne.s32.totalorder %s74, %s76
      %p83 = scmp.eq.s32.totalorder %s31, 1
      %p84 = por %p82, %p83
      %p85 = scmp.ne.s32.totalorder %s76, %s77
      %p86 = scmp.eq.s32.totalorder %s31, 0
      %p87 = por %p85, %p86
      %p88 = scmp.ne.s32.totalorder %s76, %s77
      %p89 = scmp.eq.s32.totalorder %s32, 1
      %p90 = por %p88, %p89
      %p92 = scmp.ne.s32.totalorder %s77, %s91
      %p93 = scmp.eq.s32.totalorder %s32, 0
      %p94 = por %p92, %p93
      %s96 = sadd.s32 %s95, 1
      %p99 = scmp.eq.s32.totalorder %s26, 1
      %p100 = scmp.ne.s32.totalorder %s95, %s97
      %p101 = scmp.eq.s32.totalorder %s26, 0
      %p102 = por %p100, %p101
      %p103 = scmp.ne.s32.totalorder %s95, %s97
      %p104 = scmp.eq.s32.totalorder %s31, 1
      %p105 = por %p103, %p104
      %p106 = scmp.ne.s32.totalorder %s97, %s98
      %p107 = scmp.eq.s32.totalorder %s31, 0
      %p108 = por %p106, %p107
      %p109 = scmp.ne.s32.totalorder %s97, %s98
      %p110 = scmp.eq.s32.totalorder %s32, 1
      %p111 = por %p109, %p110
      %p113 = scmp.ne.s32.totalorder %s98, %s112
      %p114 = scmp.eq.s32.totalorder %s32, 0
      %p115 = por %p113, %p114
      %s117 = sadd.s32 %s116, 1
      %p120 = scmp.eq.s32.totalorder %s26, 1
      %p121 = scmp.ne.s32.totalorder %s116, %s118
      %p122 = scmp.eq.s32.totalorder %s26, 0
      %p123 = por %p121, %p122
      %p124 = scmp.ne.s32.totalorder %s116, %s118
      %p125 = scmp.eq.s32.totalorder %s31, 1
      %p126 = por %p124, %p125
      %p127 = scmp.ne.s32.totalorder %s118, %s119
      %p128 = scmp.eq.s32.totalorder %s31, 0
      %p129 = por %p127, %p128
      %p130 = scmp.ne.s32.totalorder %s118, %s119
      %p131 = scmp.eq.s32.totalorder %s32, 1
      %p132 = por %p130, %p131
      %p134 = scmp.ne.s32.totalorder %s119, %s133
      %p135 = scmp.eq.s32.totalorder %s32, 0
      %p136 = por %p134, %p135
      %s138 = sadd.s32 %s137, 1
      %p141 = scmp.eq.s32.totalorder %s26, 1
      %p142 = scmp.ne.s32.totalorder %s137, %s139
      %p143 = scmp.eq.s32.totalorder %s26, 0
      %p144 = por %p142, %p143
      %p145 = scmp.ne.s32.totalorder %s137, %s139
      %p146 = scmp.eq.s32.totalorder %s31, 1
      %p147 = por %p145, %p146
      %p148 = scmp.ne.s32.totalorder %s139, %s140
      %p149 = scmp.eq.s32.totalorder %s31, 0
      %p150 = por %p148, %p149
      %p151 = scmp.ne.s32.totalorder %s139, %s140
      %p152 = scmp.eq.s32.totalorder %s32, 1
      %p153 = por %p151, %p152
      %p155 = scmp.ne.s32.totalorder %s140, %s154
      %p156 = scmp.eq.s32.totalorder %s32, 0
      %p157 = por %p155, %p156
      %s159 = sadd.s32 %s158, 1
      %p162 = scmp.eq.s32.totalorder %s26, 1
      %p163 = scmp.ne.s32.totalorder %s158, %s160
      %p164 = scmp.eq.s32.totalorder %s26, 0
      %p165 = por %p163, %p164
      %p166 = scmp.ne.s32.totalorder %s158, %s160
      %p167 = scmp.eq.s32.totalorder %s31, 1
      %p168 = por %p166, %p167
      %p169 = scmp.ne.s32.totalorder %s160, %s161
      %p170 = scmp.eq.s32.totalorder %s31, 0
      %p171 = por %p169, %p170
      %p172 = scmp.ne.s32.totalorder %s160, %s161
      %p173 = scmp.eq.s32.totalorder %s32, 1
      %p174 = por %p172, %p173
      %p176 = scmp.ne.s32.totalorder %s161, %s175
      %p177 = scmp.eq.s32.totalorder %s32, 0
      %p178 = por %p176, %p177
      %s180 = sadd.s32 %s179, 1
      %p183 = scmp.eq.s32.totalorder %s26, 1
      %p184 = scmp.ne.s32.totalorder %s179, %s181
      %p185 = scmp.eq.s32.totalorder %s26, 0
      %p186 = por %p184, %p185
      %p187 = scmp.ne.s32.totalorder %s179, %s181
      %p188 = scmp.eq.s32.totalorder %s31, 1
      %p189 = por %p187, %p188
      %p190 = scmp.ne.s32.totalorder %s181, %s182
      %p191 = scmp.eq.s32.totalorder %s31, 0
      %p192 = por %p190, %p191
      %p193 = scmp.ne.s32.totalorder %s181, %s182
      %p194 = scmp.eq.s32.totalorder %s32, 1
      %p195 = por %p193, %p194
      %p197 = scmp.ne.s32.totalorder %s182, %s196
      %p198 = scmp.eq.s32.totalorder %s32, 0
      %p199 = por %p197, %p198
      %s201 = sadd.s32 %s200, 1
      %p204 = scmp.eq.s32.totalorder %s26, 1
      %p205 = scmp.ne.s32.totalorder %s200, %s202
      %p206 = scmp.eq.s32.totalorder %s26, 0
      %p207 = por %p205, %p206
      %p208 = scmp.ne.s32.totalorder %s200, %s202
      %p209 = scmp.eq.s32.totalorder %s31, 1
      %p210 = por %p208, %p209
      %p211 = scmp.ne.s32.totalorder %s202, %s203
      %p212 = scmp.eq.s32.totalorder %s31, 0
      %p213 = por %p211, %p212
      %p214 = scmp.ne.s32.totalorder %s202, %s203
      %p215 = scmp.eq.s32.totalorder %s32, 1
      %p216 = por %p214, %p215
      %p218 = scmp.ne.s32.totalorder %s203, %s217
      %p219 = scmp.eq.s32.totalorder %s32, 0
      %p220 = por %p218, %p219
      %s222 = sadd.s32 %s221, 1
      %p225 = scmp.eq.s32.totalorder %s26, 1
      %p226 = scmp.ne.s32.totalorder %s221, %s223
      %p227 = scmp.eq.s32.totalorder %s26, 0
      %p228 = por %p226, %p227
      %p229 = scmp.ne.s32.totalorder %s221, %s223
      %p230 = scmp.eq.s32.totalorder %s31, 1
      %p231 = por %p229, %p230
      %p232 = scmp.ne.s32.totalorder %s223, %s224
      %p233 = scmp.eq.s32.totalorder %s31, 0
      %p234 = por %p232, %p233
      %p235 = scmp.ne.s32.totalorder %s223, %s224
      %p236 = scmp.eq.s32.totalorder %s32, 1
      %p237 = por %p235, %p236
      %p239 = scmp.ne.s32.totalorder %s224, %s238
      %p240 = scmp.eq.s32.totalorder %s32, 0
      %p241 = por %p239, %p240
      %s242 = ssub.s32 %s33, %s45
      %s243 = ssub.s32 %s34, %s41
      %s244 = sor.u32 %s242, %s243
      %p245 = scmp.eq.s32.totalorder %s244, 0
      %s247 = sadd.s32 %s246, 1
      %s248 = scalar_select %p245, %s246, %s247
      %p251 = pneg %p245
      %p252 = scmp.eq.s32.totalorder %s26, 1
      %p253 = por %p251, %p252
      %p254 = scmp.ne.s32.totalorder %s246, %s249
      %p255 = scmp.eq.s32.totalorder %s26, 0
      %p256 = por %p254, %p255
      %p257 = scmp.ne.s32.totalorder %s246, %s249
      %p258 = scmp.eq.s32.totalorder %s31, 1
      %p259 = por %p257, %p258
      %p260 = scmp.ne.s32.totalorder %s249, %s250
      %p261 = scmp.eq.s32.totalorder %s31, 0
      %p262 = por %p260, %p261
      %p263 = scmp.ne.s32.totalorder %s249, %s250
      %p264 = scmp.eq.s32.totalorder %s32, 1
      %p265 = por %p263, %p264
      %p267 = scmp.ne.s32.totalorder %s250, %s266
      %p268 = scmp.eq.s32.totalorder %s32, 0
      %p269 = por %p267, %p268
      %s270 = ssub.s32 %s33, %s45
      %s271 = ssub.s32 %s34, %s41
      %s272 = sor.u32 %s270, %s271
      %p273 = scmp.eq.s32.totalorder %s272, 0
      %s275 = sadd.s32 %s274, 1
      %s276 = scalar_select %p273, %s274, %s275
      %p279 = pneg %p273
      %p280 = scmp.eq.s32.totalorder %s26, 1
      %p281 = por %p279, %p280
      %p282 = scmp.ne.s32.totalorder %s274, %s277
      %p283 = scmp.eq.s32.totalorder %s26, 0
      %p284 = por %p282, %p283
      %p285 = scmp.ne.s32.totalorder %s274, %s277
      %p286 = scmp.eq.s32.totalorder %s31, 1
      %p287 = por %p285, %p286
      %p288 = scmp.ne.s32.totalorder %s277, %s278
      %p289 = scmp.eq.s32.totalorder %s31, 0
      %p290 = por %p288, %p289
      %p291 = scmp.ne.s32.totalorder %s277, %s278
      %p292 = scmp.eq.s32.totalorder %s32, 1
      %p293 = por %p291, %p292
      %p295 = scmp.ne.s32.totalorder %s278, %s294
      %p296 = scmp.eq.s32.totalorder %s32, 0
      %p297 = por %p295, %p296
      %s298 = ssub.s32 %s33, %s45
      %s299 = ssub.s32 %s34, %s41
      %s300 = sor.u32 %s298, %s299
      %p301 = scmp.eq.s32.totalorder %s300, 0
      %s303 = sadd.s32 %s302, 1
      %s304 = scalar_select %p301, %s302, %s303
      %p307 = pneg %p301
      %p308 = scmp.eq.s32.totalorder %s26, 1
      %p309 = por %p307, %p308
      %p310 = scmp.ne.s32.totalorder %s302, %s305
      %p311 = scmp.eq.s32.totalorder %s26, 0
      %p312 = por %p310, %p311
      %p313 = scmp.ne.s32.totalorder %s302, %s305
      %p314 = scmp.eq.s32.totalorder %s31, 1
      %p315 = por %p313, %p314
      %p316 = scmp.ne.s32.totalorder %s305, %s306
      %p317 = scmp.eq.s32.totalorder %s31, 0
      %p318 = por %p316, %p317
      %p319 = scmp.ne.s32.totalorder %s305, %s306
      %p320 = scmp.eq.s32.totalorder %s32, 1
      %p321 = por %p319, %p320
      %p323 = scmp.ne.s32.totalorder %s306, %s322
      %p324 = scmp.eq.s32.totalorder %s32, 0
      %p325 = por %p323, %p324
      %p326 = scmp.le.s32.totalorder 1, %s26
      %p327 = scmp.lt.s32.totalorder %s26, 3
      %p328 = pnand %p326, %p327
      %p329 = pneg %p328
      // Predicated region
      $region9: #{tpu_custom_call.1} parent=5 // pred_check
        _
      $region10: #{tpu_custom_call.1} parent=5 // pred_check_branch
        %331 = sbr.rel (%p328) target = $region12
      $region11: #{tpu_custom_call.1} parent=5 // pred_region
        %s332 = ssub.s32 %s26, 1
        // Predicated region
        $region13: #{tpu_custom_call.1} parent=11 // pred_check
          %p333 = pneg %p87
        $region14: #{tpu_custom_call.1} parent=11 // pred_check_branch
          %335 = sbr.rel (%p333) target = $region16
        $region15: #{tpu_custom_call.1} parent=11 // pred_region
          _
        $region16: #{tpu_custom_call.1} parent=11 // pred_fallthru
          _
        // Predicated region
        $region17: #{tpu_custom_call.1} parent=11 // pred_check
          %p336 = pneg %p108
        $region18: #{tpu_custom_call.1} parent=11 // pred_check_branch
          %338 = sbr.rel (%p336) target = $region20
        $region19: #{tpu_custom_call.1} parent=11 // pred_region
          _
        $region20: #{tpu_custom_call.1} parent=11 // pred_fallthru
          _
        // Predicated region
        $region21: #{tpu_custom_call.1} parent=11 // pred_check
          %p339 = pneg %p129
        $region22: #{tpu_custom_call.1} parent=11 // pred_check_branch
          %341 = sbr.rel (%p339) target = $region24
        $region23: #{tpu_custom_call.1} parent=11 // pred_region
          _
        $region24: #{tpu_custom_call.1} parent=11 // pred_fallthru
          _
        // Predicated region
        $region25: #{tpu_custom_call.1} parent=11 // pred_check
          %p342 = pneg %p150
        $region26: #{tpu_custom_call.1} parent=11 // pred_check_branch
          %344 = sbr.rel (%p342) target = $region28
        $region27: #{tpu_custom_call.1} parent=11 // pred_region
          _
        $region28: #{tpu_custom_call.1} parent=11 // pred_fallthru
          _
        // Predicated region
        $region29: #{tpu_custom_call.1} parent=11 // pred_check
          %p345 = pneg %p171
        $region30: #{tpu_custom_call.1} parent=11 // pred_check_branch
          %347 = sbr.rel (%p345) target = $region32
        $region31: #{tpu_custom_call.1} parent=11 // pred_region
          %s349 = ssub.s32 256, 256
          %350 = vsyncadd [#allocation3], %s349
          %s351 = sshll.u32 [#allocation2], 4
          %s352 = int_to_ptr.vmem [resolvable:$true] %s351
          %357 = dma.hbm_to_vmem [thread:$0]  %s5, 256, %s352, [#allocation3], 64, 64, 4
        $region32: #{tpu_custom_call.1} parent=11 // pred_fallthru
          _
        // Predicated region
        $region33: #{tpu_custom_call.1} parent=11 // pred_check
          %p358 = pneg %p192
        $region34: #{tpu_custom_call.1} parent=11 // pred_check_branch
          %360 = sbr.rel (%p358) target = $region36
        $region35: #{tpu_custom_call.1} parent=11 // pred_region
          _
        $region36: #{tpu_custom_call.1} parent=11 // pred_fallthru
          _
        // Predicated region
        $region37: #{tpu_custom_call.1} parent=11 // pred_check
          %p361 = pneg %p213
        $region38: #{tpu_custom_call.1} parent=11 // pred_check_branch
          %363 = sbr.rel (%p361) target = $region40
        $region39: #{tpu_custom_call.1} parent=11 // pred_region
          %s365 = ssub.s32 256, 256
          %366 = vsyncadd [#allocation6], %s365
          %s367 = sshll.u32 [#allocation5], 4
          %s368 = int_to_ptr.vmem [resolvable:$true] %s367
          %373 = dma.hbm_to_vmem [thread:$0]  %s7, 256, %s368, [#allocation6], 64, 64, 4
        $region40: #{tpu_custom_call.1} parent=11 // pred_fallthru
          _
        // Predicated region
        $region41: #{tpu_custom_call.1} parent=11 // pred_check
          %p374 = pneg %p234
        $region42: #{tpu_custom_call.1} parent=11 // pred_check_branch
          %376 = sbr.rel (%p374) target = $region44
        $region43: #{tpu_custom_call.1} parent=11 // pred_region
          _
        $region44: #{tpu_custom_call.1} parent=11 // pred_fallthru
          _
      $region12: #{tpu_custom_call.1} parent=5 // pred_fallthru
        _
      %p377 = scmp.lt.s32.totalorder %s26, 2
      // Predicated region
      $region45: #{tpu_custom_call.1} parent=5 // pred_check
        %p378 = pneg %p377
      $region46: #{tpu_custom_call.1} parent=5 // pred_check_branch
        %380 = sbr.rel (%p378) target = $region48
      $region47: #{tpu_custom_call.1} parent=5 // pred_region
        // Predicated region
        $region49: #{tpu_custom_call.1} parent=47 // pred_check
          %p381 = pneg %p60
        $region50: #{tpu_custom_call.1} parent=47 // pred_check_branch
          %383 = sbr.rel (%p381) target = $region52
        $region51: #{tpu_custom_call.1} parent=47 // pred_region
          %p384 = scmp.lt.s32.totalorder %s33, 1
          %s385 = scalar_select %p384, %s33, 1
          %p386 = scmp.lt.s32.totalorder %s34, 0
          %s387 = scalar_select %p386, %s34, 0
          %s388 = sadd.s32 %s387, %s385
          %s389 = smul.addr %s388, 8
          %s390 = scalar_lea.vmem %s0, %s389
        $region52: #{tpu_custom_call.1} parent=47 // pred_fallthru
          _
      $region48: #{tpu_custom_call.1} parent=5 // pred_fallthru
        _
      %p391 = scmp.le.s32.totalorder 1, %s26
      %p392 = scmp.lt.s32.totalorder %s26, 3
      %p393 = pnand %p391, %p392
      %p394 = pneg %p393
      // Predicated region
      $region53: #{tpu_custom_call.1} parent=5 // pred_check
        _
      $region54: #{tpu_custom_call.1} parent=5 // pred_check_branch
        %396 = sbr.rel (%p393) target = $region56
      $region55: #{tpu_custom_call.1} parent=5 // pred_region
        %s397 = ssub.s32 %s26, 1
        // Predicated region
        $region57: #{tpu_custom_call.1} parent=55 // pred_check
          %p398 = pneg %p171
        $region58: #{tpu_custom_call.1} parent=55 // pred_check_branch
          %400 = sbr.rel (%p398) target = $region60
        $region59: #{tpu_custom_call.1} parent=55 // pred_region
          %401 = dma.done [#allocation3], 256
        $region60: #{tpu_custom_call.1} parent=55 // pred_fallthru
          _
        // Predicated region
        $region61: #{tpu_custom_call.1} parent=55 // pred_check
          %p402 = pneg %p213
        $region62: #{tpu_custom_call.1} parent=55 // pred_check_branch
          %404 = sbr.rel (%p402) target = $region64
        $region63: #{tpu_custom_call.1} parent=55 // pred_region
          %405 = dma.done [#allocation6], 256
        $region64: #{tpu_custom_call.1} parent=55 // pred_fallthru
          _
        %p406 = scmp.lt.s32.totalorder %s35, 1
        %s407 = scalar_select %p406, %s35, 1
        %p408 = scmp.lt.s32.totalorder %s36, 0
        %s409 = scalar_select %p408, %s36, 0
        %s410 = sadd.s32 %s409, %s407
        %s411 = smul.addr %s410, 8
        %s412 = scalar_lea.vmem %s0, %s411
        %p413 = pneg %p66
        %p414 = pneg %p63
        %p415 = pneg %p87
        %p416 = pneg %p84
        %p417 = pneg %p108
        %p418 = pneg %p105
        %p419 = pneg %p129
        %p420 = pneg %p126
        %p421 = pneg %p150
        %p422 = pneg %p147
        %p423 = pneg %p171
        %p424 = pneg %p168
        %p425 = pneg %p192
        %p426 = pneg %p189
        %p427 = pneg %p213
        %p428 = pneg %p210
        %p429 = pneg %p234
        %p430 = pneg %p231
        %p431 = pneg %p262
        %p432 = pneg %p259
        %s433 = sand.u32 %s249, 1
        %s434 = scalar_lea.sflag [#allocation4], %s433
        %s435 = sand.u32 %s249, 1
        %s436 = smul.addr %s435, 16
        %s437 = scalar_lea.vmem [#allocation7], %s436
        %p438 = pneg %p290
        %p439 = pneg %p287
        %s440 = sand.u32 %s31, 1
        %s441 = scalar_lea.sflag [#allocation9], %s440
        %s442 = sand.u32 %s277, 1
        %s443 = smul.addr %s442, 16
        %s444 = scalar_lea.vmem [#allocation8], %s443
        %p445 = pneg %p318
        %p446 = pneg %p315
        %s447 = sand.u32 %s31, 1
        %s448 = scalar_lea.sflag [#allocation9], %s447
        %s449 = sand.u32 %s305, 1
        %s450 = smul.addr %s449, 16
        %s451 = scalar_lea.vmem [#allocation10], %s450
        %p452 = scmp.lt.s32.totalorder %s35, 1
        %s453 = scalar_select %p452, %s35, 1
        %p454 = scmp.lt.s32.totalorder %s36, 0
        %s455 = scalar_select %p454, %s36, 0
        %s456 = sadd.s32 %s455, %s453
        %s457 = smul.addr %s456, 8
        %s458 = scalar_lea.vmem %s0, %s457
        %v460 = vld [vmem:[%s458] sm:$0xff]
        %vm461 = vcmask 261120
        %v462 = vsel %vm461, %v460, 0.0
        %463 = vadd.xlane.f32.xlu0 %v462
        %v464 = vpop.xlane.xlu0 %463
        %v465 = vrcp.pop 32.0
        %v466 = vmul.f32 %v464, %v465
        %v467 = vsub.f32 %v460, %v466
        %v468 = vmul.f32 %v467, %v467
        %v469 = vsel %vm461, %v468, 0.0
        %470 = vadd.xlane.f32.xlu0 %v469
        %v471 = vpop.xlane.xlu0 %470
        %v472 = vmul.f32 %v471, %v465
        %v473 = vadd.f32 %v472, 1e-05
        %v474 = vrsqrt.pop %v473
        %v475 = vmul.f32 %v467, %v474
        %v476 = vld [vmem:[%s1] sm:$0x1]
        %v478 = vlaneseq
        %v479 = vshrl.u32 %v478, 7
        %v480 = vsub.s32 0, %v479
        %v481 = vrot.slane %v476, %v480
        %v483 = vmul.f32 %v475, %v481
        %v484 = vld [vmem:[%s2] sm:$0x1]
        %v486 = vlaneseq
        %v487 = vshrl.u32 %v486, 7
        %v488 = vsub.s32 0, %v487
        %v489 = vrot.slane %v484, %v488
        %v491 = vadd.f32 %v483, %v489
        %v492 = vmax.f32 %v491, 0.0
        %v493 = vpack.c.bf16 %v492, %v492
        %v494 = vld [vmem:[%s3] sm:$0xf]
        %v495 = vld [vmem:[%s3 + $0x4] sm:$0xf]
        %v496 = vld [vmem:[%s3 + $0x8] sm:$0xf]
        %v497 = vld [vmem:[%s3 + $0xc] sm:$0xf]
        %v498 = vld [vmem:[%s4] sm:$0x1]
        %v500 = vlaneseq
        %v501 = vshrl.u32 %v500, 7
        %v502 = vsub.s32 0, %v501
        %v503 = vrot.slane %v498, %v502
        %v509 = vunpack.c.l.b16 %v494
        %v510 = vunpack.c.l.b16 %v495
        %v511 = vunpack.c.l.b16 %v496
        %v512 = vunpack.c.l.b16 %v497
        %v513 = vpack.c.b16 %v510, %v509
        %v514 = vpack.c.b16 %v512, %v511
        %v518 = vsel %vm461, %v493, 0
        %520 = vmatprep.subr.bf16.mxu0 0
        %521 = vmatpush1.bf16.msra.mxu0 0
        %522 = vmatprep.subr.bf16.mxu0 0
        %523 = vmatpush1.bf16.msra.mxu0 0
        %524 = vmatprep.subr.bf16.mxu0 0
        %525 = vmatpush1.bf16.msra.mxu0 0
        %526 = vmatprep.subr.bf16.mxu0 0
        %527 = vmatpush1.bf16.msra.mxu0 0
        %528 = vmatprep.subr.bf16.mxu0 0
        %529 = vmatpush1.bf16.msra.mxu0 0
        %530 = vmatprep.subr.bf16.mxu0 0
        %531 = vmatpush1.bf16.msra.mxu0 0
        %532 = vmatprep.subr.bf16.mxu0 0
        %533 = vmatpush1.bf16.msra.mxu0 %v514
        %534 = vmatprep.subr.bf16.mxu0 0
        %535 = vmatpush1.bf16.msra.mxu0 %v513
        %536 = vmatprep.subr.bf16.mxu0 0
        %537 = vmatpush2.bf16.msra.mxu0 0
        %538 = vmatprep.subr.bf16.mxu0 0
        %539 = vmatpush2.bf16.msra.mxu0 0
        %540 = vmatprep.subr.bf16.mxu0 0
        %541 = vmatpush2.bf16.msra.mxu0 0
        %542 = vmatprep.subr.bf16.mxu0 0
        %543 = vmatpush2.bf16.msra.mxu0 0
        %544 = vmatprep.subr.bf16.mxu0 0
        %545 = vmatpush2.bf16.msra.mxu0 0
        %546 = vmatprep.subr.bf16.mxu0 0
        %547 = vmatpush2.bf16.msra.mxu0 0
        %548 = vmatprep.subr.bf16.mxu0 0
        %549 = vmatpush2.bf16.msra.mxu0 0
        %550 = vmatprep.subr.bf16.mxu0 0
        %551 = vmatpush2.bf16.msra.mxu0 0
        %552 = vmatprep.mubr.bf16.mxu0 0
        %553 = vmatmul.mubr.bf16.gmra.mxu0 %v518
        %v554 = vpop.f32.mrf.mxu0
        %v555 = vadd.f32 %v503, %v554
        %v556 = vpop.f32.mrf.mxu0
        %v557 = vpop.f32.mrf.mxu0
        %v558 = vpop.f32.mrf.mxu0
        %559 = vdwg.mxu0
        %v560 = vld [vmem:[#allocation2] sm:$0xf]
        %v561 = vld [vmem:[#allocation2 + $0x4] sm:$0xf]
        %v562 = vld [vmem:[#allocation2 + $0x8] sm:$0xf]
        %v563 = vld [vmem:[#allocation2 + $0xc] sm:$0xf]
        %v564 = vld [vmem:[%s6] sm:$0xff]
        %v565 = vld [vmem:[%s6 + $0x8] sm:$0xff]
        %v566 = vld [vmem:[%s6 + $0x10] sm:$0xff]
        %v567 = vld [vmem:[%s6 + $0x18] sm:$0xff]
        %569 = vset.pattern.permute.xlu0 0
        %570 = vperm.xlu0 %569, %v564
        %v571 = vpop.permute.xlu0 %570
        %574 = vset.pattern.permute.xlu0 0
        %575 = vperm.xlu0 %574, %v565
        %v576 = vpop.permute.xlu0 %575
        %579 = vset.pattern.permute.xlu0 0
        %580 = vperm.xlu0 %579, %v566
        %v581 = vpop.permute.xlu0 %580
        %584 = vset.pattern.permute.xlu0 0
        %585 = vperm.xlu0 %584, %v567
        %v586 = vpop.permute.xlu0 %585
        %v592 = vunpack.c.l.b16 %v560
        %v593 = vunpack.c.l.b16 %v561
        %v594 = vunpack.c.l.b16 %v562
        %v595 = vunpack.c.l.b16 %v563
        %v596 = vpack.c.b16 %v593, %v592
        %v597 = vpack.c.b16 %v595, %v594
        %v599 = vsel %vm461, %v596, 0
        %v602 = vsel %vm461, %v597, 0
        %604 = vmatprep.subr.bf16.mxu0 0
        %605 = vmatpush1.bf16.xpose.msra.mxu0 0
        %606 = vmatprep.subr.bf16.mxu0 0
        %607 = vmatpush1.bf16.xpose.msra.mxu0 0
        %608 = vmatprep.subr.bf16.mxu0 0
        %609 = vmatpush1.bf16.xpose.msra.mxu0 0
        %610 = vmatprep.subr.bf16.mxu0 0
        %611 = vmatpush1.bf16.xpose.msra.mxu0 0
        %612 = vmatprep.subr.bf16.mxu0 0
        %613 = vmatpush1.bf16.xpose.msra.mxu0 0
        %614 = vmatprep.subr.bf16.mxu0 0
        %615 = vmatpush1.bf16.xpose.msra.mxu0 0
        %616 = vmatprep.subr.bf16.mxu0 0
        %617 = vmatpush1.bf16.xpose.msra.mxu0 0
        %618 = vmatprep.subr.bf16.mxu0 0
        %619 = vmatpush1.bf16.xpose.msra.mxu0 %v518
        %620 = vmatprep.subr.bf16.mxu0 0
        %621 = vmatpush2.bf16.xpose.msra.mxu0 0
        %622 = vmatprep.subr.bf16.mxu0 0
        %623 = vmatpush2.bf16.xpose.msra.mxu0 0
        %624 = vmatprep.subr.bf16.mxu0 0
        %625 = vmatpush2.bf16.xpose.msra.mxu0 0
        %626 = vmatprep.subr.bf16.mxu0 0
        %627 = vmatpush2.bf16.xpose.msra.mxu0 0
        %628 = vmatprep.subr.bf16.mxu0 0
        %629 = vmatpush2.bf16.xpose.msra.mxu0 0
        %630 = vmatprep.subr.bf16.mxu0 0
        %631 = vmatpush2.bf16.xpose.msra.mxu0 0
        %632 = vmatprep.subr.bf16.mxu0 0
        %633 = vmatpush2.bf16.xpose.msra.mxu0 0
        %634 = vmatprep.subr.bf16.mxu0 0
        %635 = vmatpush2.bf16.xpose.msra.mxu0 0
        %636 = vmatprep.mubr.bf16.mxu0 0
        %637 = vmatmul.mubr.bf16.gmra.mxu0 %v599
        %v638 = vpop.f32.mrf.mxu0
        %v639 = vadd.f32 %v571, %v638
        %v640 = vpop.f32.mrf.mxu0
        %v641 = vpop.f32.mrf.mxu0
        %v642 = vadd.f32 %v576, %v641
        %v643 = vpop.f32.mrf.mxu0
        %644 = vmatprep.mubr.bf16.mxu0 0
        %645 = vmatmul.mubr.bf16.gmra.mxu0 %v602
        %v646 = vpop.f32.mrf.mxu0
        %v647 = vadd.f32 %v581, %v646
        %v648 = vpop.f32.mrf.mxu0
        %v649 = vpop.f32.mrf.mxu0
        %v650 = vadd.f32 %v586, %v649
        %v651 = vpop.f32.mrf.mxu0
        %652 = vdwg.mxu0
        %v653 = vld [vmem:[#allocation5] sm:$0xf]
        %v654 = vld [vmem:[#allocation5 + $0x4] sm:$0xf]
        %v655 = vld [vmem:[#allocation5 + $0x8] sm:$0xf]
        %v656 = vld [vmem:[#allocation5 + $0xc] sm:$0xf]
        %v657 = vld [vmem:[%s8] sm:$0x1]
        %v659 = vlaneseq
        %v660 = vshrl.u32 %v659, 7
        %v661 = vsub.s32 0, %v660
        %v662 = vrot.slane %v657, %v661
        %v668 = vunpack.c.l.b16 %v653
        %v669 = vunpack.c.l.b16 %v654
        %v670 = vunpack.c.l.b16 %v655
        %v671 = vunpack.c.l.b16 %v656
        %v672 = vpack.c.b16 %v669, %v668
        %v673 = vpack.c.b16 %v671, %v670
        %676 = vmatprep.subr.bf16.mxu0 0
        %677 = vmatpush1.bf16.msra.mxu0 0
        %678 = vmatprep.subr.bf16.mxu0 0
        %679 = vmatpush1.bf16.msra.mxu0 0
        %680 = vmatprep.subr.bf16.mxu0 0
        %681 = vmatpush1.bf16.msra.mxu0 0
        %682 = vmatprep.subr.bf16.mxu0 0
        %683 = vmatpush1.bf16.msra.mxu0 0
        %684 = vmatprep.subr.bf16.mxu0 0
        %685 = vmatpush1.bf16.msra.mxu0 0
        %686 = vmatprep.subr.bf16.mxu0 0
        %687 = vmatpush1.bf16.msra.mxu0 0
        %688 = vmatprep.subr.bf16.mxu0 0
        %689 = vmatpush1.bf16.msra.mxu0 %v673
        %690 = vmatprep.subr.bf16.mxu0 0
        %691 = vmatpush1.bf16.msra.mxu0 %v672
        %692 = vmatprep.subr.bf16.mxu0 0
        %693 = vmatpush2.bf16.msra.mxu0 0
        %694 = vmatprep.subr.bf16.mxu0 0
        %695 = vmatpush2.bf16.msra.mxu0 0
        %696 = vmatprep.subr.bf16.mxu0 0
        %697 = vmatpush2.bf16.msra.mxu0 0
        %698 = vmatprep.subr.bf16.mxu0 0
        %699 = vmatpush2.bf16.msra.mxu0 0
        %700 = vmatprep.subr.bf16.mxu0 0
        %701 = vmatpush2.bf16.msra.mxu0 0
        %702 = vmatprep.subr.bf16.mxu0 0
        %703 = vmatpush2.bf16.msra.mxu0 0
        %704 = vmatprep.subr.bf16.mxu0 0
        %705 = vmatpush2.bf16.msra.mxu0 0
        %706 = vmatprep.subr.bf16.mxu0 0
        %707 = vmatpush2.bf16.msra.mxu0 0
        %708 = vmatprep.mubr.bf16.mxu0 0
        %709 = vmatmul.mubr.bf16.gmra.mxu0 %v518
        %v710 = vpop.f32.mrf.mxu0
        %v711 = vadd.f32 %v662, %v710
        %v712 = vpop.f32.mrf.mxu0
        %v713 = vpop.f32.mrf.mxu0
        %v714 = vpop.f32.mrf.mxu0
        %715 = vdwg.mxu0
        %v716 = vpack.c.bf16 %v555, %v555
        %vm717 = vcmask 60416
        %718 = vst.msk [vmem:[%s437] sm:$0xf] %vm717, %v716
        %v719 = vpack.c.bf16 %v639, %v639
        %720 = vst.msk [vmem:[%s444] sm:$0xf] %vm717, %v719
        %v721 = vpack.c.bf16 %v711, %v711
        %722 = vst.msk [vmem:[%s451] sm:$0xf] %vm717, %v721
        %v724 = vunpack.c.l.b16 %v716
        %v725 = vpack.c.b16 %v724, %v724
        %726 = vrot.lane.b32.xlu0 %v725, 120
        %v727 = vpop.permute.xlu0 %726
        %s729 = scalar_lea.vmem %s437, 4 [#allocation7]
        %730 = vst.msk [vmem:[%s729] sm:$0xf] %vm717, %v727
        %v731 = vpack.c.bf16 %v642, %v642
        %s732 = scalar_lea.vmem %s444, 4 [#allocation8]
        %733 = vst.msk [vmem:[%s732] sm:$0xf] %vm717, %v731
        %v735 = vunpack.c.l.b16 %v721
        %v736 = vpack.c.b16 %v735, %v735
        %737 = vrot.lane.b32.xlu0 %v736, 120
        %v738 = vpop.permute.xlu0 %737
        %s740 = scalar_lea.vmem %s451, 4 [#allocation10]
        %741 = vst.msk [vmem:[%s740] sm:$0xf] %vm717, %v738
        %742 = vrot.lane.b32.xlu0 %v725, 112
        %v743 = vpop.permute.xlu0 %742
        %s745 = scalar_lea.vmem %s437, 8 [#allocation7]
        %746 = vst.msk [vmem:[%s745] sm:$0xf] %vm717, %v743
        %v747 = vpack.c.bf16 %v647, %v647
        %s748 = scalar_lea.vmem %s444, 8 [#allocation8]
        %749 = vst.msk [vmem:[%s748] sm:$0xf] %vm717, %v747
        %750 = vrot.lane.b32.xlu0 %v736, 112
        %v751 = vpop.permute.xlu0 %750
        %s753 = scalar_lea.vmem %s451, 8 [#allocation10]
        %754 = vst.msk [vmem:[%s753] sm:$0xf] %vm717, %v751
        %755 = vrot.lane.b32.xlu0 %v725, 104
        %v756 = vpop.permute.xlu0 %755
        %s758 = scalar_lea.vmem %s437, 12 [#allocation7]
        %759 = vst.msk [vmem:[%s758] sm:$0xf] %vm717, %v756
        %v760 = vpack.c.bf16 %v650, %v650
        %s761 = scalar_lea.vmem %s444, 12 [#allocation8]
        %762 = vst.msk [vmem:[%s761] sm:$0xf] %vm717, %v760
        %763 = vrot.lane.b32.xlu0 %v736, 104
        %v764 = vpop.permute.xlu0 %763
        %s766 = scalar_lea.vmem %s451, 12 [#allocation10]
        %767 = vst.msk [vmem:[%s766] sm:$0xf] %vm717, %v764
        %s768 = sand.u32 %s249, 1
        %s769 = scalar_lea.sflag [#allocation4], %s768
        %s770 = sand.u32 %s249, 1
        %s771 = smul.addr %s770, 16
        %s772 = scalar_lea.vmem [#allocation7], %s771
        %s773 = sand.u32 %s31, 1
        %s774 = scalar_lea.sflag [#allocation9], %s773
        %s775 = sand.u32 %s277, 1
        %s776 = smul.addr %s775, 16
        %s777 = scalar_lea.vmem [#allocation8], %s776
        %s778 = sand.u32 %s31, 1
        %s779 = scalar_lea.sflag [#allocation9], %s778
        %s780 = sand.u32 %s305, 1
        %s781 = smul.addr %s780, 16
        %s782 = scalar_lea.vmem [#allocation10], %s781
        // Predicated region
        $region65: #{tpu_custom_call.1} parent=55 // pred_check
          %p783 = pneg %p259
        $region66: #{tpu_custom_call.1} parent=55 // pred_check_branch
          %785 = sbr.rel (%p783) target = $region68
        $region67: #{tpu_custom_call.1} parent=55 // pred_region
          %s787 = ssub.s32 256, 256
          %788 = vsyncadd %s769, %s787
          %s789 = smul.addr %s35, 4
          %s790 = sadd.s32 %s36, %s789
          %s791 = smul.addr %s790, 64
          %s792 = scalar_lea.hbm %s9, %s791
          %s793 = sshll.u32 %s772, 4
          %s794 = int_to_ptr.vmem [resolvable:$true] %s793
          %799 = dma.vmem_to_hbm [thread:$0]  %s794, 256, %s792, %s769, 64, 64, 4
        $region68: #{tpu_custom_call.1} parent=55 // pred_fallthru
          _
        // Predicated region
        $region69: #{tpu_custom_call.1} parent=55 // pred_check
          %p800 = pneg %p287
        $region70: #{tpu_custom_call.1} parent=55 // pred_check_branch
          %802 = sbr.rel (%p800) target = $region72
        $region71: #{tpu_custom_call.1} parent=55 // pred_region
          %s804 = ssub.s32 256, 256
          %805 = vsyncadd %s774, %s804
          %s806 = smul.addr %s35, 4
          %s807 = sadd.s32 %s36, %s806
          %s808 = smul.addr %s807, 64
          %s809 = scalar_lea.hbm %s10, %s808
          %s810 = sshll.u32 %s777, 4
          %s811 = int_to_ptr.vmem [resolvable:$true] %s810
          %816 = dma.vmem_to_hbm [thread:$0]  %s811, 256, %s809, %s774, 64, 64, 4
        $region72: #{tpu_custom_call.1} parent=55 // pred_fallthru
          _
        // Predicated region
        $region73: #{tpu_custom_call.1} parent=55 // pred_check
          %p817 = pneg %p315
        $region74: #{tpu_custom_call.1} parent=55 // pred_check_branch
          %819 = sbr.rel (%p817) target = $region76
        $region75: #{tpu_custom_call.1} parent=55 // pred_region
          %s821 = ssub.s32 256, 256
          %822 = vsyncadd %s779, %s821
          %s823 = smul.addr %s35, 4
          %s824 = sadd.s32 %s36, %s823
          %s825 = smul.addr %s824, 64
          %s826 = scalar_lea.hbm %s11, %s825
          %s827 = sshll.u32 %s782, 4
          %s828 = int_to_ptr.vmem [resolvable:$true] %s827
          %833 = dma.vmem_to_hbm [thread:$0]  %s828, 256, %s826, %s779, 64, 64, 4
        $region76: #{tpu_custom_call.1} parent=55 // pred_fallthru
          _
      $region56: #{tpu_custom_call.1} parent=5 // pred_fallthru
        _
      %p834 = scmp.le.s32.totalorder 2, %s26
      // Predicated region
      $region77: #{tpu_custom_call.1} parent=5 // pred_check
        %p835 = pneg %p834
      $region78: #{tpu_custom_call.1} parent=5 // pred_check_branch
        %837 = sbr.rel (%p835) target = $region80
      $region79: #{tpu_custom_call.1} parent=5 // pred_region
        %s838 = ssub.s32 %s26, 2
        // Predicated region
        $region81: #{tpu_custom_call.1} parent=79 // pred_check
          %p839 = pneg %p265
        $region82: #{tpu_custom_call.1} parent=79 // pred_check_branch
          %841 = sbr.rel (%p839) target = $region84
        $region83: #{tpu_custom_call.1} parent=79 // pred_region
          %s842 = sand.u32 %s250, 1
          %s843 = scalar_lea.sflag [#allocation4], %s842
          %s844 = sand.u32 %s250, 1
          %s845 = smul.addr %s844, 16
          %s846 = scalar_lea.vmem [#allocation7], %s845
          %847 = dma.done %s843, 256
        $region84: #{tpu_custom_call.1} parent=79 // pred_fallthru
          _
        // Predicated region
        $region85: #{tpu_custom_call.1} parent=79 // pred_check
          %p848 = pneg %p293
        $region86: #{tpu_custom_call.1} parent=79 // pred_check_branch
          %850 = sbr.rel (%p848) target = $region88
        $region87: #{tpu_custom_call.1} parent=79 // pred_region
          %s851 = sand.u32 %s32, 1
          %s852 = scalar_lea.sflag [#allocation9], %s851
          %s853 = sand.u32 %s278, 1
          %s854 = smul.addr %s853, 16
          %s855 = scalar_lea.vmem [#allocation8], %s854
          %856 = dma.done %s852, 256
        $region88: #{tpu_custom_call.1} parent=79 // pred_fallthru
          _
        // Predicated region
        $region89: #{tpu_custom_call.1} parent=79 // pred_check
          %p857 = pneg %p321
        $region90: #{tpu_custom_call.1} parent=79 // pred_check_branch
          %859 = sbr.rel (%p857) target = $region92
        $region91: #{tpu_custom_call.1} parent=79 // pred_region
          %s860 = sand.u32 %s32, 1
          %s861 = scalar_lea.sflag [#allocation9], %s860
          %s862 = sand.u32 %s306, 1
          %s863 = smul.addr %s862, 16
          %s864 = scalar_lea.vmem [#allocation10], %s863
          %865 = dma.done %s861, 256
        $region92: #{tpu_custom_call.1} parent=79 // pred_fallthru
          _
      $region80: #{tpu_custom_call.1} parent=5 // pred_fallthru
        _
    $region6: #{tpu_custom_call.1} parent=1 // loop_footer
      %s30 = sadd.s32 1, %s26
    $region7: #{tpu_custom_call.1} parent=1 // loop_footer_branch
      %25 = sbr.rel target = $region3
    $region8: #{tpu_custom_call.1} parent=1 // loop_exit
      _
    %866 = vsyncpa [#allocation3], 1
    %s867 = scalar_lea.sflag [#allocation3], 1
    %868 = vsyncpa %s867, 1
    %869 = vsyncpa [#allocation6], 1
    %870 = vsyncpa [#allocation4], 1
    %s871 = scalar_lea.sflag [#allocation4], 1
    %872 = vsyncpa %s871, 1
    %873 = vsyncpa [#allocation9], 1
    %s874 = scalar_lea.sflag [#allocation9], 1
    %875 = vsyncpa %s874, 1

</llo_original>
